<compile_context>
chip_gen: v6e
topology: v6e:2x2x1
jax: 0.10.0
libtpu: 0.0.40
codegen_flags: <defaults>
</compile_context>

<pallas_src>
import jax
import jax.numpy as jnp
from jax.experimental import pallas as pl
from jax.experimental.pallas import tpu as pltpu


def _round_up(x, m):
    return (x + m - 1) // m * m


# ---------------------------------------------------------------------------
# Kernel
# ---------------------------------------------------------------------------
def _embedding_kernel(ids_ref,            # SMEM  (N_pad,) int32   (prefetch)
                      tab_ref,            # HBM   (V_pad, E_pad) f32
                      wp_ref,             # VMEM  (E_pad, H_pad)
                      w1_ref, b1_ref,     # VMEM  (H_pad, 2H_pad), (1, 2H_pad)
                      w2_ref, b2_ref,
                      out_ref,            # VMEM  (tm, H_pad)
                      emb_buf,            # VMEM  (2, tm, E_pad) f32 scratch
                      sem):               # DMA semaphores, shape (2,)
    i = pl.program_id(0)
    n_tiles = pl.num_programs(0)
    tm = emb_buf.shape[1]
    h = w1_ref.shape[1] // 2              # padded hidden size (128-multiple)

    def start_gather(tile, slot):
        """Issue one row DMA per token of `tile` into buffer `slot`."""
        base = tile * tm

        @pl.loop(0, tm)
        def _(r):
            tok = ids_ref[base + r]
            pltpu.make_async_copy(
                tab_ref.at[pl.ds(tok, 1)],           # (1, E_pad) HBM row
                emb_buf.at[slot, pl.ds(r, 1)],       # (1, E_pad) VMEM row
                sem.at[slot],
            ).start()

    def wait_gather(slot):
        """Consume the `tm` row-copy completions of buffer `slot`.

        One wait per issued row copy (all copies are the same size), so the
        semaphore is exactly drained no matter what units it counts in.  The
        src/dst refs are placeholders: a wait only uses sem + transfer size.
        """
        cp = pltpu.make_async_copy(tab_ref.at[pl.ds(0, 1)],
                                   emb_buf.at[slot, pl.ds(0, 1)],
                                   sem.at[slot])

        @pl.loop(0, tm)
        def _(r):
            cp.wait()

    # Prime the pipeline on the first step.
    @pl.when(i == 0)
    def _():
        start_gather(0, 0)

    # Issue the next tile's gather before consuming the current one so its
    # DMAs overlap this step's matmuls (buffer (i+1)%2 was last read at step
    # i-1, which has already completed -- no hazard).
    @pl.when(i + 1 < n_tiles)
    def _():
        start_gather(i + 1, (i + 1) % 2)

    slot = i % 2
    wait_gather(slot)

    # Projection: (tm, E_pad) @ (E_pad, H_pad) -> (tm, H_pad), f32 accumulate.
    x = jnp.dot(emb_buf[slot].astype(wp_ref.dtype), wp_ref[...],
                preferred_element_type=jnp.float32)

    # Two highway layers; transform+gate fused into one (H_pad, 2*H_pad)
    # matmul each (single MXU launch per layer, lane-dense 2H output).
    # Padded hidden columns stay exactly 0: padded rows/cols of wp/w1/w2 and
    # padded bias entries are exactly 0, so t == 0 and (t - x) == 0 there
    # (the gate's sigmoid(0) = 0.5 multiplies 0).
    for w_ref, b_ref in ((w1_ref, b1_ref), (w2_ref, b2_ref)):
        y = jnp.dot(x.astype(w_ref.dtype), w_ref[...],
                    preferred_element_type=jnp.float32) + b_ref[...]
        t = jnp.maximum(y[:, :h], 0.0)    # relu(transform)
        g = jax.nn.sigmoid(y[:, h:])      # sigmoid(gate)
        x = x + g * (t - x)               # == g*t + (1-g)*x

    out_ref[...] = x.astype(out_ref.dtype)


# ---------------------------------------------------------------------------
# One-time constant preparation (outside the per-call hot path)
# ---------------------------------------------------------------------------
def prepare_embedding_params(word_vectors, w_proj,
                             w_t1, b_t1, w_g1, b_g1,
                             w_t2, b_t2, w_g2, b_g2,
                             *, use_bf16=True):
    """Pad / cast / fuse all constants once.

    Weights are stored as (in_features, out_features) so the kernel computes
    x @ W + b, equivalent to PyTorch's x @ W.T + b with W = (out, in).
    """
    V, E = word_vectors.shape
    H = w_proj.shape[1]
    E_pad = _round_up(E, 128)
    H_pad = _round_up(H, 128)
    V_pad = _round_up(V, 8)

    mat_dtype = jnp.bfloat16 if use_bf16 else jnp.float32

    # HBM-resident embedding table, zero padded; rows are DMA-gathered
    # in-kernel.  Kept f32 (see module docstring TODO about uint32 packing).
    table = jnp.zeros((V_pad, E_pad), jnp.float32)
    table = table.at[:V, :E].set(word_vectors.astype(jnp.float32))

    # Projection (no bias).  Padded rows/cols are exactly 0 -- required so
    # padded hidden columns stay 0 through the highway layers.
    wp = jnp.zeros((E_pad, H_pad), jnp.float32).at[:E, :H].set(w_proj)
    wp = wp.astype(mat_dtype)

    def fuse(w_t, b_t, w_g, b_g):
        # [transform | gate] fused along the output axis, zero padded to
        # (H_pad, 2*H_pad).
        w = jnp.zeros((H_pad, 2 * H_pad), jnp.float32)
        w = w.at[:H, :H].set(w_t)
        w = w.at[:H, H_pad:H_pad + H].set(w_g)
        b = jnp.zeros((1, 2 * H_pad), jnp.float32)
        b = b.at[0, :H].set(b_t)
        b = b.at[0, H_pad:H_pad + H].set(b_g)
        return w.astype(mat_dtype), b             # bias stays f32

    w1, b1 = fuse(w_t1, b_t1, w_g1, b_g1)
    w2, b2 = fuse(w_t2, b_t2, w_g2, b_g2)

    return dict(table=table, wp=wp, w1=w1, b1=b1, w2=w2, b2=b2,
                E=E, H=H, E_pad=E_pad, H_pad=H_pad)


# ---------------------------------------------------------------------------
# Forward pass (inference mode: dropout is the identity)
# ---------------------------------------------------------------------------
def embedding_forward(token_ids, params, *, tm=2048, out_dtype=jnp.float32,
                      unpad=True, vmem_limit_bytes=None):
    table, wp, w1, b1, w2, b2 = (params[k] for k in
                                 ("table", "wp", "w1", "b1", "w2", "b2"))
    H, E_pad, H_pad = params["H"], params["E_pad"], params["H_pad"]

    B, S = token_ids.shape
    N = B * S
    n_ceil = _round_up(N, 128)

    # Token-tile size: a 128-multiple, capped so the grid keeps >= 2 steps
    # whenever possible (cross-step gather prefetch + writeback pipelining).
    if n_ceil >= 256:
        tm_eff = min(tm, (n_ceil // 256) * 128)
    else:
        tm_eff = n_ceil
    N_pad = _round_up(N, tm_eff)
    n_tiles = N_pad // tm_eff

    # Flattened, zero-padded token ids (padded rows gather row 0 and compute
    # values that are sliced off below -- harmless).
    ids = jnp.zeros((N_pad,), jnp.int32)
    ids = ids.at[:N].set(token_ids.reshape(-1).astype(jnp.int32))

    full = lambda shape: pl.BlockSpec(shape, lambda i, ids_ref: (0, 0))

    grid_spec = pltpu.PrefetchScalarGridSpec(
        num_scalar_prefetch=1,                        # token ids -> SMEM
        grid=(n_tiles,),
        in_specs=[
            pl.BlockSpec(memory_space=pl.ANY),        # embedding table (HBM)
            full((E_pad, H_pad)),                     # projection
            full((H_pad, 2 * H_pad)), full((1, 2 * H_pad)),   # highway 1
            full((H_pad, 2 * H_pad)), full((1, 2 * H_pad)),   # highway 2
        ],
        out_specs=pl.BlockSpec((tm_eff, H_pad), lambda i, ids_ref: (i, 0)),
        scratch_shapes=[
            pltpu.VMEM((2, tm_eff, E_pad), table.dtype),   # gathered rows
            pltpu.SemaphoreType.DMA((2,)),                 # one per slot
        ],
    )

    out = pl.pallas_call(
        _embedding_kernel,
        out_shape=jax.ShapeDtypeStruct((N_pad, H_pad), out_dtype),
        grid_spec=grid_spec,
        compiler_params=pltpu.CompilerParams(
            # Cross-step gather prefetch carries state in scratch -> the grid
            # must run sequentially.
            dimension_semantics=("arbitrary",),
            vmem_limit_bytes=vmem_limit_bytes,
        ),
    )(ids, table, wp, w1, b1, w2, b2)

    if not unpad:
        return out                       # padded lane-dense (N_pad, H_pad)
    return out[:N, :H].reshape(B, S, H)


# ---------------------------------------------------------------------------
# Pure-JAX reference
# ---------------------------------------------------------------------------
def _reference_forward(token_ids, word_vectors, w_proj,
                       w_t1, b_t1, w_g1, b_g1,
                       w_t2, b_t2, w_g2, b_g2):
    emb = jnp.take(word_vectors, token_ids, axis=0)        # (B, S, E)
    x = emb @ w_proj                                       # (B, S, H)
    for (wg, bg, wt, bt) in [(w_g1, b_g1, w_t1, b_t1),
                             (w_g2, b_g2, w_t2, b_t2)]:
        g = jax.nn.sigmoid(x @ wg + bg)
        t = jnp.maximum(x @ wt + bt, 0.0)
        x = g * t + (1.0 - g) * x
    return x


if __name__ == "__main__":
    key = jax.random.PRNGKey(0)
    keys = jax.random.split(key, 12)

    # Small deterministic config (BiDAF-like, shrunk).
    B, S = 2, 8
    V, E, H = 50, 64, 32
    drop_prob = 0.1   # unused: inference mode, F.dropout is the identity

    word_vectors = jax.random.normal(keys[0], (V, E), jnp.float32) * 0.5
    w_proj = jax.random.normal(keys[1], (E, H), jnp.float32) * (1.0 / E ** 0.5)

    def lin(kw, kb):
        w = jax.random.normal(kw, (H, H), jnp.float32) * (1.0 / H ** 0.5)
        b = jax.random.normal(kb, (H,), jnp.float32) * 0.1
        return w, b

    w_t1, b_t1 = lin(keys[2], keys[3])
    w_g1, b_g1 = lin(keys[4], keys[5])
    w_t2, b_t2 = lin(keys[6], keys[7])
    w_g2, b_g2 = lin(keys[8], keys[9])

    weights = (w_proj, w_t1, b_t1, w_g1, b_g1, w_t2, b_t2, w_g2, b_g2)

    token_ids = jax.random.randint(keys[10], (B, S), 0, V, jnp.int32)
    ref = _reference_forward(token_ids, word_vectors, *weights)

    # f32 path: tight structural check against the reference.
    params_f32 = prepare_embedding_params(word_vectors, *weights,
                                          use_bf16=False)
    out_f32 = jax.block_until_ready(
        embedding_forward(token_ids, params_f32, out_dtype=jnp.float32))
    assert out_f32.shape == (B, S, H), out_f32.shape
    err = float(jnp.max(jnp.abs(out_f32 - ref)))
    assert err < 1e-4, err

    # bf16 weights + bf16 output (perf defaults): looser tolerance.
    params_bf16 = prepare_embedding_params(word_vectors, *weights,
                                           use_bf16=True)
    out_bf16 = jax.block_until_ready(
        embedding_forward(token_ids, params_bf16, out_dtype=jnp.bfloat16))
    assert out_bf16.shape == (B, S, H), out_bf16.shape
    err = float(jnp.max(jnp.abs(out_bf16.astype(jnp.float32) - ref)))
    assert err < 5e-2, err

    # Multi-tile config: exercises the cross-step double-buffered gather
    # (3 grid steps of 128 tokens, with padded tail rows).
    B2, S2 = 4, 72                       # N = 288 -> N_pad = 384, 3 tiles
    token_ids2 = jax.random.randint(keys[11], (B2, S2), 0, V, jnp.int32)
    ref2 = _reference_forward(token_ids2, word_vectors, *weights)
    out2 = jax.block_until_ready(
        embedding_forward(token_ids2, params_f32, out_dtype=jnp.float32))
    assert out2.shape == (B2, S2, H), out2.shape
    err = float(jnp.max(jnp.abs(out2 - ref2)))
    assert err < 1e-4, err

    print("KERNEL_OK")
</pallas_src>

<mosaic_0001>
module attributes {stable_mosaic.version = 11 : i64} {
  func.func @_embedding_kernel(%arg0: i32, %arg1: memref<128xi32, #tpu.memory_space<smem>>, %arg2: memref<56x128xf32, #tpu.memory_space<any>>, %arg3: memref<128x128xf32, #tpu.memory_space<vmem>>, %arg4: memref<128x256xf32, #tpu.memory_space<vmem>>, %arg5: memref<1x256xf32, #tpu.memory_space<vmem>>, %arg6: memref<128x256xf32, #tpu.memory_space<vmem>>, %arg7: memref<1x256xf32, #tpu.memory_space<vmem>>, %arg8: memref<128x128xf32, #tpu.memory_space<vmem>>, %arg9: memref<2x128x128xf32, #tpu.memory_space<vmem>>, %arg10: memref<2x!tpu.dma_semaphore, #tpu.memory_space<semaphore_mem>>) attributes {dimension_semantics = [#tpu.dimension_semantics<arbitrary>], iteration_bounds = array<i64: 1>, scalar_prefetch = 1 : i64, scratch_operands = 2 : i64, tpu.core_type = #tpu.core_type<tc>, window_params = [{}, {pipeline_mode = #tpu.pipeline_mode<synchronous>, transform_indices = @transform_1, window_bounds = array<i64: 128, 128>}, {pipeline_mode = #tpu.pipeline_mode<synchronous>, transform_indices = @transform_2, window_bounds = array<i64: 128, 256>}, {pipeline_mode = #tpu.pipeline_mode<synchronous>, transform_indices = @transform_3, window_bounds = array<i64: 1, 256>}, {pipeline_mode = #tpu.pipeline_mode<synchronous>, transform_indices = @transform_4, window_bounds = array<i64: 128, 256>}, {pipeline_mode = #tpu.pipeline_mode<synchronous>, transform_indices = @transform_5, window_bounds = array<i64: 1, 256>}, {transform_indices = @transform_6, window_bounds = array<i64: 128, 128>}]} {
    %c0_i32 = arith.constant 0 : i32
    %0 = arith.cmpi eq, %arg0, %c0_i32 : i32
    %1 = arith.extui %0 : i1 to i32
    %c0_i32_0 = arith.constant 0 : i32
    %2 = arith.cmpi ne, %1, %c0_i32_0 : i32
    scf.if %2 {
      %c0_i32_29 = arith.constant 0 : i32
      %c128_i32_30 = arith.constant 128 : i32
      %58 = arith.addi %c0_i32_29, %c128_i32_30 : i32
      %c1_i32_31 = arith.constant 1 : i32
      scf.for %arg11 = %c0_i32_29 to %58 step %c1_i32_31  : i32 {
        %c1_i32_33 = arith.constant 1 : i32
        %59 = arith.muli %arg11, %c1_i32_33 : i32
        %c0_i32_34 = arith.constant 0 : i32
        %60 = arith.addi %c0_i32_34, %59 : i32
        %c0_i32_35 = arith.constant 0 : i32
        %61 = arith.addi %c0_i32_35, %60 : i32
        %62 = arith.index_cast %61 : i32 to index
        %63 = memref.load %arg1[%62] : memref<128xi32, #tpu.memory_space<smem>>
        %c0_i32_36 = arith.constant 0 : i32
        %c0_i32_37 = arith.constant 0 : i32
        %c0_i32_38 = arith.constant 0 : i32
        %64 = tpu.memref_slice %arg2[%63, %c0_i32_38] : memref<56x128xf32, #tpu.memory_space<any>> -> memref<1x128xf32, #tpu.memory_space<any>>
        %c0_i32_39 = arith.constant 0 : i32
        %65 = tpu.memref_slice %arg9[%c0_i32_36, %60, %c0_i32_39] : memref<2x128x128xf32, #tpu.memory_space<vmem>> -> memref<1x1x128xf32, #tpu.memory_space<vmem>>
        %66 = tpu.memref_squeeze %65 : memref<1x1x128xf32, #tpu.memory_space<vmem>> -> memref<1x128xf32, #tpu.memory_space<vmem>>
        %67 = tpu.memref_slice %arg10[%c0_i32_37] : memref<2x!tpu.dma_semaphore, #tpu.memory_space<semaphore_mem>> -> memref<1x!tpu.dma_semaphore, #tpu.memory_space<semaphore_mem>>
        %68 = tpu.memref_squeeze %67 : memref<1x!tpu.dma_semaphore, #tpu.memory_space<semaphore_mem>> -> memref<!tpu.dma_semaphore, #tpu.memory_space<semaphore_mem>>
        tpu.enqueue_dma source(%64 : memref<1x128xf32, #tpu.memory_space<any>>) target(%66 : memref<1x128xf32, #tpu.memory_space<vmem>>) target_semaphore(%68 : memref<!tpu.dma_semaphore, #tpu.memory_space<semaphore_mem>>)
      }
      %c128_i32_32 = arith.constant 128 : i32
    } else {
    }
    %c1_i32 = arith.constant 1 : i32
    %3 = arith.addi %arg0, %c1_i32 : i32
    %c1_i32_1 = arith.constant 1 : i32
    %4 = arith.cmpi slt, %3, %c1_i32_1 : i32
    %5 = arith.extui %4 : i1 to i32
    %c0_i32_2 = arith.constant 0 : i32
    %6 = arith.cmpi ne, %5, %c0_i32_2 : i32
    scf.if %6 {
      %c1_i32_29 = arith.constant 1 : i32
      %58 = arith.addi %arg0, %c1_i32_29 : i32
      %c1_i32_30 = arith.constant 1 : i32
      %59 = arith.addi %arg0, %c1_i32_30 : i32
      %c2_i32_31 = arith.constant 2 : i32
      %c0_i32_32 = arith.constant 0 : i32
      %60 = arith.cmpi eq, %c2_i32_31, %c0_i32_32 : i32
      %c1_i32_33 = arith.constant 1 : i32
      %61 = arith.select %60, %c1_i32_33, %c2_i32_31 : i32
      %62 = arith.remsi %59, %61 : i32
      %c0_i32_34 = arith.constant 0 : i32
      %63 = arith.cmpi ne, %62, %c0_i32_34 : i32
      %c0_i32_35 = arith.constant 0 : i32
      %64 = arith.cmpi slt, %62, %c0_i32_35 : i32
      %c0_i32_36 = arith.constant 0 : i32
      %65 = arith.cmpi slt, %61, %c0_i32_36 : i32
      %66 = arith.xori %64, %65 : i1
      %67 = arith.andi %66, %63 : i1
      %68 = arith.addi %62, %61 : i32
      %69 = arith.select %67, %68, %62 : i32
      %c128_i32_37 = arith.constant 128 : i32
      %70 = arith.muli %58, %c128_i32_37 : i32
      %c0_i32_38 = arith.constant 0 : i32
      %c128_i32_39 = arith.constant 128 : i32
      %71 = arith.addi %c0_i32_38, %c128_i32_39 : i32
      %c1_i32_40 = arith.constant 1 : i32
      scf.for %arg11 = %c0_i32_38 to %71 step %c1_i32_40  : i32 {
        %c1_i32_42 = arith.constant 1 : i32
        %72 = arith.muli %arg11, %c1_i32_42 : i32
        %c0_i32_43 = arith.constant 0 : i32
        %73 = arith.addi %c0_i32_43, %72 : i32
        %74 = arith.addi %70, %73 : i32
        %75 = arith.index_cast %74 : i32 to index
        %76 = memref.load %arg1[%75] : memref<128xi32, #tpu.memory_space<smem>>
        %c0_i32_44 = arith.constant 0 : i32
        %77 = tpu.memref_slice %arg2[%76, %c0_i32_44] : memref<56x128xf32, #tpu.memory_space<any>> -> memref<1x128xf32, #tpu.memory_space<any>>
        %c0_i32_45 = arith.constant 0 : i32
        %78 = tpu.memref_slice %arg9[%69, %73, %c0_i32_45] : memref<2x128x128xf32, #tpu.memory_space<vmem>> -> memref<1x1x128xf32, #tpu.memory_space<vmem>>
        %79 = tpu.memref_squeeze %78 : memref<1x1x128xf32, #tpu.memory_space<vmem>> -> memref<1x128xf32, #tpu.memory_space<vmem>>
        %80 = tpu.memref_slice %arg10[%69] : memref<2x!tpu.dma_semaphore, #tpu.memory_space<semaphore_mem>> -> memref<1x!tpu.dma_semaphore, #tpu.memory_space<semaphore_mem>>
        %81 = tpu.memref_squeeze %80 : memref<1x!tpu.dma_semaphore, #tpu.memory_space<semaphore_mem>> -> memref<!tpu.dma_semaphore, #tpu.memory_space<semaphore_mem>>
        tpu.enqueue_dma source(%77 : memref<1x128xf32, #tpu.memory_space<any>>) target(%79 : memref<1x128xf32, #tpu.memory_space<vmem>>) target_semaphore(%81 : memref<!tpu.dma_semaphore, #tpu.memory_space<semaphore_mem>>)
      }
      %c128_i32_41 = arith.constant 128 : i32
    } else {
    }
    %c2_i32 = arith.constant 2 : i32
    %c0_i32_3 = arith.constant 0 : i32
    %7 = arith.cmpi eq, %c2_i32, %c0_i32_3 : i32
    %c1_i32_4 = arith.constant 1 : i32
    %8 = arith.select %7, %c1_i32_4, %c2_i32 : i32
    %9 = arith.remsi %arg0, %8 : i32
    %c0_i32_5 = arith.constant 0 : i32
    %10 = arith.cmpi ne, %9, %c0_i32_5 : i32
    %c0_i32_6 = arith.constant 0 : i32
    %11 = arith.cmpi slt, %9, %c0_i32_6 : i32
    %c0_i32_7 = arith.constant 0 : i32
    %12 = arith.cmpi slt, %8, %c0_i32_7 : i32
    %13 = arith.xori %11, %12 : i1
    %14 = arith.andi %13, %10 : i1
    %15 = arith.addi %9, %8 : i32
    %16 = arith.select %14, %15, %9 : i32
    %c0_i32_8 = arith.constant 0 : i32
    %c128_i32 = arith.constant 128 : i32
    %17 = arith.addi %c0_i32_8, %c128_i32 : i32
    %c1_i32_9 = arith.constant 1 : i32
    scf.for %arg11 = %c0_i32_8 to %17 step %c1_i32_9  : i32 {
      %c0_i32_29 = arith.constant 0 : i32
      %c0_i32_30 = arith.constant 0 : i32
      %58 = tpu.memref_slice %arg2[%c0_i32_29, %c0_i32_30] : memref<56x128xf32, #tpu.memory_space<any>> -> memref<1x128xf32, #tpu.memory_space<any>>
      %c0_i32_31 = arith.constant 0 : i32
      %c0_i32_32 = arith.constant 0 : i32
      %59 = tpu.memref_slice %arg9[%16, %c0_i32_31, %c0_i32_32] : memref<2x128x128xf32, #tpu.memory_space<vmem>> -> memref<1x1x128xf32, #tpu.memory_space<vmem>>
      %60 = tpu.memref_squeeze %59 : memref<1x1x128xf32, #tpu.memory_space<vmem>> -> memref<1x128xf32, #tpu.memory_space<vmem>>
      %61 = tpu.memref_slice %arg10[%16] : memref<2x!tpu.dma_semaphore, #tpu.memory_space<semaphore_mem>> -> memref<1x!tpu.dma_semaphore, #tpu.memory_space<semaphore_mem>>
      %62 = tpu.memref_squeeze %61 : memref<1x!tpu.dma_semaphore, #tpu.memory_space<semaphore_mem>> -> memref<!tpu.dma_semaphore, #tpu.memory_space<semaphore_mem>>
      tpu.wait_dma2 semaphore(%62 : memref<!tpu.dma_semaphore, #tpu.memory_space<semaphore_mem>>) src(%58 : memref<1x128xf32, #tpu.memory_space<any>>) dst(%60 : memref<1x128xf32, #tpu.memory_space<vmem>>)
    }
    %18 = arith.index_cast %16 : i32 to index
    %c0 = arith.constant 0 : index
    %c0_10 = arith.constant 0 : index
    %19 = vector.load %arg9[%18, %c0, %c0_10] : memref<2x128x128xf32, #tpu.memory_space<vmem>>, vector<1x128x128xf32>
    %20 = vector.shape_cast %19 : vector<1x128x128xf32> to vector<128x128xf32>
    %c0_11 = arith.constant 0 : index
    %c0_12 = arith.constant 0 : index
    %21 = vector.load %arg3[%c0_11, %c0_12] : memref<128x128xf32, #tpu.memory_space<vmem>>, vector<128x128xf32>
    %cst = arith.constant dense<0.000000e+00> : vector<128x128xf32>
    %22 = tpu.matmul %20, %21, %cst {dimension_numbers = #tpu.dot_dimension_numbers<[1], [0], [0], [1], [0, 0, 1, 1], [], []>} : vector<128x128xf32>, vector<128x128xf32>, vector<128x128xf32> -> vector<128x128xf32>
    %c0_13 = arith.constant 0 : index
    %c0_14 = arith.constant 0 : index
    %23 = vector.load %arg4[%c0_13, %c0_14] : memref<128x256xf32, #tpu.memory_space<vmem>>, vector<128x256xf32>
    %cst_15 = arith.constant dense<0.000000e+00> : vector<128x256xf32>
    %24 = tpu.matmul %22, %23, %cst_15 {dimension_numbers = #tpu.dot_dimension_numbers<[1], [0], [0], [1], [0, 0, 1, 1], [], []>} : vector<128x128xf32>, vector<128x256xf32>, vector<128x256xf32> -> vector<128x256xf32>
    %c0_16 = arith.constant 0 : index
    %c0_17 = arith.constant 0 : index
    %25 = vector.load %arg5[%c0_16, %c0_17] : memref<1x256xf32, #tpu.memory_space<vmem>>, vector<1x256xf32>
    %26 = vector.broadcast %25 : vector<1x256xf32> to vector<128x256xf32>
    %27 = arith.addf %24, %26 : vector<128x256xf32>
    %28 = vector.extract_strided_slice %27 {offsets = [0, 0], sizes = [128, 128], strides = [1, 1]} : vector<128x256xf32> to vector<128x128xf32>
    %cst_18 = arith.constant 0.000000e+00 : f32
    %29 = vector.broadcast %cst_18 : f32 to vector<128x128xf32>
    %30 = arith.maximumf %28, %29 : vector<128x128xf32>
    %31 = vector.extract_strided_slice %27 {offsets = [0, 128], sizes = [128, 128], strides = [1, 1]} : vector<128x256xf32> to vector<128x128xf32>
    %32 = arith.negf %31 : vector<128x128xf32>
    %33 = math.exp %32 : vector<128x128xf32>
    %cst_19 = arith.constant 1.000000e+00 : f32
    %34 = vector.broadcast %cst_19 : f32 to vector<128x128xf32>
    %35 = arith.addf %34, %33 : vector<128x128xf32>
    %36 = arith.divf %34, %35 : vector<128x128xf32>
    %37 = arith.subf %30, %22 : vector<128x128xf32>
    %38 = arith.mulf %36, %37 : vector<128x128xf32>
    %39 = arith.addf %22, %38 : vector<128x128xf32>
    %c0_20 = arith.constant 0 : index
    %c0_21 = arith.constant 0 : index
    %40 = vector.load %arg6[%c0_20, %c0_21] : memref<128x256xf32, #tpu.memory_space<vmem>>, vector<128x256xf32>
    %cst_22 = arith.constant dense<0.000000e+00> : vector<128x256xf32>
    %41 = tpu.matmul %39, %40, %cst_22 {dimension_numbers = #tpu.dot_dimension_numbers<[1], [0], [0], [1], [0, 0, 1, 1], [], []>} : vector<128x128xf32>, vector<128x256xf32>, vector<128x256xf32> -> vector<128x256xf32>
    %c0_23 = arith.constant 0 : index
    %c0_24 = arith.constant 0 : index
    %42 = vector.load %arg7[%c0_23, %c0_24] : memref<1x256xf32, #tpu.memory_space<vmem>>, vector<1x256xf32>
    %43 = vector.broadcast %42 : vector<1x256xf32> to vector<128x256xf32>
    %44 = arith.addf %41, %43 : vector<128x256xf32>
    %45 = vector.extract_strided_slice %44 {offsets = [0, 0], sizes = [128, 128], strides = [1, 1]} : vector<128x256xf32> to vector<128x128xf32>
    %cst_25 = arith.constant 0.000000e+00 : f32
    %46 = vector.broadcast %cst_25 : f32 to vector<128x128xf32>
    %47 = arith.maximumf %45, %46 : vector<128x128xf32>
    %48 = vector.extract_strided_slice %44 {offsets = [0, 128], sizes = [128, 128], strides = [1, 1]} : vector<128x256xf32> to vector<128x128xf32>
    %49 = arith.negf %48 : vector<128x128xf32>
    %50 = math.exp %49 : vector<128x128xf32>
    %cst_26 = arith.constant 1.000000e+00 : f32
    %51 = vector.broadcast %cst_26 : f32 to vector<128x128xf32>
    %52 = arith.addf %51, %50 : vector<128x128xf32>
    %53 = arith.divf %51, %52 : vector<128x128xf32>
    %54 = arith.subf %47, %39 : vector<128x128xf32>
    %55 = arith.mulf %53, %54 : vector<128x128xf32>
    %56 = arith.addf %39, %55 : vector<128x128xf32>
    %c0_27 = arith.constant 0 : index
    %c0_28 = arith.constant 0 : index
    %57 = vector.load %arg8[%c0_27, %c0_28] : memref<128x128xf32, #tpu.memory_space<vmem>>, vector<128x128xf32>
    tpu.vector_store %arg8[%c0_27, %c0_28], %56 {strides = array<i32>} : memref<128x128xf32, #tpu.memory_space<vmem>>, vector<128x128xf32>,
    return
  }
  func.func @transform_1(%arg0: i32, %arg1: memref<128xi32, #tpu.memory_space<smem>>) -> (i32, i32) {
    %c0_i32 = arith.constant 0 : i32
    %c0_i32_0 = arith.constant 0 : i32
    %c0_i32_1 = arith.constant 0 : i32
    return %c0_i32, %c0_i32_0 : i32, i32
  }
  func.func @transform_2(%arg0: i32, %arg1: memref<128xi32, #tpu.memory_space<smem>>) -> (i32, i32) {
    %c0_i32 = arith.constant 0 : i32
    %c0_i32_0 = arith.constant 0 : i32
    %c0_i32_1 = arith.constant 0 : i32
    return %c0_i32, %c0_i32_0 : i32, i32
  }
  func.func @transform_3(%arg0: i32, %arg1: memref<128xi32, #tpu.memory_space<smem>>) -> (i32, i32) {
    %c0_i32 = arith.constant 0 : i32
    %c0_i32_0 = arith.constant 0 : i32
    %c0_i32_1 = arith.constant 0 : i32
    return %c0_i32, %c0_i32_0 : i32, i32
  }
  func.func @transform_4(%arg0: i32, %arg1: memref<128xi32, #tpu.memory_space<smem>>) -> (i32, i32) {
    %c0_i32 = arith.constant 0 : i32
    %c0_i32_0 = arith.constant 0 : i32
    %c0_i32_1 = arith.constant 0 : i32
    return %c0_i32, %c0_i32_0 : i32, i32
  }
  func.func @transform_5(%arg0: i32, %arg1: memref<128xi32, #tpu.memory_space<smem>>) -> (i32, i32) {
    %c0_i32 = arith.constant 0 : i32
    %c0_i32_0 = arith.constant 0 : i32
    %c0_i32_1 = arith.constant 0 : i32
    return %c0_i32, %c0_i32_0 : i32, i32
  }
  func.func @transform_6(%arg0: i32, %arg1: memref<128xi32, #tpu.memory_space<smem>>) -> (i32, i32) {
    %c0_i32 = arith.constant 0 : i32
    %c0_i32_0 = arith.constant 0 : i32
    return %arg0, %c0_i32 : i32, i32
  }
}

</mosaic_0001>

<llo_original>
// kernel: tpu_custom_call.1
$region0: #{tpu_custom_call.1}
  #allocation0 [shape = 'u32[]', space=smem, size = 0x4, offset = 0x4, fixed_abs, tag = 'smem constant byte address 0x4 - core index']
  #allocation1 [shape = 'u32[144,128]{1,0:T(1,128)}', space=vmem, size = 0x12000, scoped, tag = 'internal scratch']
  #allocation2 [shape = 'f32[2,128,128]{2,1,0:T(8,128)}', space=vmem, size = 0x20000, scoped, tag = 'scratch operand']
  #allocation3 [shape = 's32[2]{0}', space=sflag, size = 0x8, scoped, tag = 'scratch operand']
  #allocation4 [shape = 's32[1]{0}', space=sflag, size = 0x4, scoped, tag = 'scoped memory for tpu_custom_call.1']
  #allocation5 [shape = 'u8[512]{0}', space=smem, size = 0x200, scoped, tag = 'prefetched SMEM operand 0']
  #allocation13 [shape = 's32[]', space=sflag, size = 0x4, offset = 0, fixed_abs, tag = 'sflag constant byte address 0x0 - dummy sync flag']
  #allocation14 [shape = 's32[]', space=sflag, size = 0x4, offset = 0, fixed_abs, tag = 'sflag constant byte address 0x0 - dummy sync flag']
  #allocation15 [shape = 'u32[]', space=smem, size = 0x4, offset = 0x44, fixed_abs, tag = 'smem constant byte address 0x44 - assertion arg 0']
  #allocation16 [shape = 'u32[]', space=smem, size = 0x4, offset = 0x48, fixed_abs, tag = 'smem constant byte address 0x48 - assertion arg 1']
  #allocation17 [shape = 's32[]', space=sflag, size = 0x4, offset = 0, fixed_abs, tag = 'sflag constant byte address 0x0 - dummy sync flag']
  #allocation18 [shape = 's32[]', space=sflag, size = 0x4, offset = 0, fixed_abs, tag = 'sflag constant byte address 0x0 - dummy sync flag']
  %s0 = inlined_call_operand.hbm [shape: s32[128], index: 0, kind: input, shape index: {}]
  %s1 = inlined_call_operand.hbm [shape: f32[56,128], index: 1, kind: input, shape index: {}]
  %s2 = inlined_call_operand.hbm [shape: f32[128,128], index: 2, kind: input, shape index: {}]
  %s3 = inlined_call_operand.hbm [shape: f32[128,256], index: 3, kind: input, shape index: {}]
  %s4 = inlined_call_operand.vmem [shape: f32[1,256], index: 4, kind: input, shape index: {}]
  %s5 = inlined_call_operand.hbm [shape: f32[128,256], index: 5, kind: input, shape index: {}]
  %s6 = inlined_call_operand.vmem [shape: f32[1,256], index: 6, kind: input, shape index: {}]
  %s7 = inlined_call_operand.hbm [shape: f32[128,128], index: 7, kind: output, shape index: {}]
  %s8 = sld [smem:[#allocation0]]
  $region79: #{tpu_custom_call.1} parent=0
    _
  %s10 = ssub.s32 1, %s8
  %s11 = scalar_select 0, %s10, %s8
  %13 = dma.hbm_to_smem %s0, 16, [#allocation5], [#allocation4]
  %14 = dma.done [#allocation4], 16
  %15 = sfence
  $region1: #{tpu_custom_call.1} parent=0
    #allocation6 [shape = 'u8[65536]{0}', space=vmem, size = 0x10000, scoped, tag = 'input window, operand 2, single buffered']
    #allocation7 [shape = 's32[1]{0}', space=sflag, size = 0x4, scoped, tag = 'scoped memory for tpu_custom_call.1']
    #allocation8 [shape = 's32[1]{0}', space=sflag, size = 0x4, scoped, tag = 'scoped memory for tpu_custom_call.1']
    #allocation9 [shape = 'u8[131072]{0}', space=vmem, size = 0x20000, scoped, tag = 'input window, operand 3, single buffered']
    #allocation10 [shape = 's32[1]{0}', space=sflag, size = 0x4, scoped, tag = 'scoped memory for tpu_custom_call.1']
    #allocation11 [shape = 'u8[131072]{0}', space=vmem, size = 0x20000, scoped, tag = 'input window, operand 5, single buffered']
    #allocation12 [shape = 'u8[65536]{0}', space=vmem, size = 0x10000, scoped, tag = 'output window, operand 0, single buffered']
    %16 = vsyncpa [#allocation7], 0
    %17 = vsyncpa [#allocation10], 0
    %18 = vsyncpa [#allocation8], 0
    // Predicated region
    $region2: #{tpu_custom_call.1} parent=1 // pred_check
      _
    $region3: #{tpu_custom_call.1} parent=1 // pred_check_branch
      %20 = sbr.rel (0) target = $region5
    $region4: #{tpu_custom_call.1} parent=1 // pred_region
      %s22 = ssub.s32 2048, 2048
      %23 = vsyncadd [#allocation7], %s22
      %s24 = sshll.u32 [#allocation6], 4
      %s25 = int_to_ptr.vmem [resolvable:$true] %s24
      %30 = dma.hbm_to_vmem [thread:$0]  %s2, 2048, %s25, [#allocation7], 128, 128, 8
    $region5: #{tpu_custom_call.1} parent=1 // pred_fallthru
      _
    // Predicated region
    $region6: #{tpu_custom_call.1} parent=1 // pred_check
      _
    $region7: #{tpu_custom_call.1} parent=1 // pred_check_branch
      %32 = sbr.rel (0) target = $region9
    $region8: #{tpu_custom_call.1} parent=1 // pred_region
      %s34 = ssub.s32 4096, 4096
      %35 = vsyncadd [#allocation10], %s34
      %s36 = sshll.u32 [#allocation9], 4
      %s37 = int_to_ptr.vmem [resolvable:$true] %s36
      %42 = dma.hbm_to_vmem [thread:$0]  %s3, 4096, %s37, [#allocation10], 256, 256, 16
    $region9: #{tpu_custom_call.1} parent=1 // pred_fallthru
      _
    // Predicated region
    $region10: #{tpu_custom_call.1} parent=1 // pred_check
      _
    $region11: #{tpu_custom_call.1} parent=1 // pred_check_branch
      %44 = sbr.rel (0) target = $region13
    $region12: #{tpu_custom_call.1} parent=1 // pred_region
      _
    $region13: #{tpu_custom_call.1} parent=1 // pred_fallthru
      _
    // Predicated region
    $region14: #{tpu_custom_call.1} parent=1 // pred_check
      _
    $region15: #{tpu_custom_call.1} parent=1 // pred_check_branch
      %46 = sbr.rel (0) target = $region17
    $region16: #{tpu_custom_call.1} parent=1 // pred_region
      %s48 = ssub.s32 4096, 4096
      %49 = vsyncadd [#allocation10], %s48
      %s50 = sshll.u32 [#allocation11], 4
      %s51 = int_to_ptr.vmem [resolvable:$true] %s50
      %56 = dma.hbm_to_vmem [thread:$0]  %s5, 4096, %s51, [#allocation10], 256, 256, 16
    $region17: #{tpu_custom_call.1} parent=1 // pred_fallthru
      _
    // Predicated region
    $region18: #{tpu_custom_call.1} parent=1 // pred_check
      _
    $region19: #{tpu_custom_call.1} parent=1 // pred_check_branch
      %58 = sbr.rel (0) target = $region21
    $region20: #{tpu_custom_call.1} parent=1 // pred_region
      _
    $region21: #{tpu_custom_call.1} parent=1 // pred_fallthru
      _
    // Predicated region
    $region22: #{tpu_custom_call.1} parent=1 // pred_check
      _
    $region23: #{tpu_custom_call.1} parent=1 // pred_check_branch
      %60 = sbr.rel (0) target = $region25
    $region24: #{tpu_custom_call.1} parent=1 // pred_region
      %61 = dma.done [#allocation7], 2048
    $region25: #{tpu_custom_call.1} parent=1 // pred_fallthru
      _
    // Predicated region
    $region26: #{tpu_custom_call.1} parent=1 // pred_check
      _
    $region27: #{tpu_custom_call.1} parent=1 // pred_check_branch
      %63 = sbr.rel (0) target = $region29
    $region28: #{tpu_custom_call.1} parent=1 // pred_region
      %64 = dma.done [#allocation10], 4096
    $region29: #{tpu_custom_call.1} parent=1 // pred_fallthru
      _
    // Predicated region
    $region30: #{tpu_custom_call.1} parent=1 // pred_check
      _
    $region31: #{tpu_custom_call.1} parent=1 // pred_check_branch
      %66 = sbr.rel (0) target = $region33
    $region32: #{tpu_custom_call.1} parent=1 // pred_region
      %67 = dma.done [#allocation10], 4096
    $region33: #{tpu_custom_call.1} parent=1 // pred_fallthru
      _
    %p68 = scmp.eq.s32.totalorder 0, 0
    // Predicated region
    $region34: #{tpu_custom_call.1} parent=1 // pred_check
      %p69 = pneg %p68
    $region35: #{tpu_custom_call.1} parent=1 // pred_check_branch
      %71 = sbr.rel (%p69) target = $region37
    $region36: #{tpu_custom_call.1} parent=1 // pred_region
      loop: start=0, step=1, limit=128
      $region38: #{tpu_custom_call.1} parent=36 // loop_pre_header
        _
      $region39: #{tpu_custom_call.1} parent=36 // loop_header
        %s73 = sphi 0, %s77
        %p74 = scmp.ge.s32.totalorder %s73, 128
      $region40: #{tpu_custom_call.1} parent=36 // loop_header_branch
        %76 = sbr.rel (%p74) target = $region44
      $region41: #{tpu_custom_call.1} parent=36 // loop_body
        %s78 = sld [smem:[#allocation5 + %s73]]
        %s79 = smul.addr %s78, 16
        %s80 = scalar_lea.hbm %s1, %s79
        %s81 = scalar_lea.vmem [#allocation2], %s73
        // Predicated region
        $region45: #{tpu_custom_call.1} parent=41 // pred_check
          _
        $region46: #{tpu_custom_call.1} parent=41 // pred_check_branch
          %83 = sbr.rel target = $region48
        $region47: #{tpu_custom_call.1} parent=41 // pred_region
          %84 = sst [smem:[#allocation15]] [#allocation14]
          %85 = sst [smem:[#allocation16]] [#allocation13]
        $region48: #{tpu_custom_call.1} parent=41 // pred_fallthru
          _
        %87 = shalt.err (0)
        %s89 = sshll.u32 %s81, 4
        %s90 = int_to_ptr.vmem [resolvable:$true] %s89
        %92 = dma.hbm_to_vmem [thread:$0]  %s80, 16, %s90, [#allocation3]
      $region42: #{tpu_custom_call.1} parent=36 // loop_footer
        %s77 = sadd.s32 1, %s73
      $region43: #{tpu_custom_call.1} parent=36 // loop_footer_branch
        %72 = sbr.rel target = $region39
      $region44: #{tpu_custom_call.1} parent=36 // loop_exit
        _
    $region37: #{tpu_custom_call.1} parent=1 // pred_fallthru
      _
    %s93 = sadd.s32 0, 1
    %p94 = scmp.lt.s32.totalorder %s93, 1
    // Predicated region
    $region49: #{tpu_custom_call.1} parent=1 // pred_check
      %p95 = pneg %p94
    $region50: #{tpu_custom_call.1} parent=1 // pred_check_branch
      %97 = sbr.rel (%p95) target = $region52
    $region51: #{tpu_custom_call.1} parent=1 // pred_region
      %p98 = scmp.lt.s32.totalorder %s93, 0
      %s99 = ssub.s32 0, %s93
      %s100 = scalar_select %p98, %s99, %s93
      %s101 = sand.u32 %s100, 1
      %s102 = ssub.s32 0, %s101
      %s103 = scalar_select %p98, %s102, %s101
      %p104 = scmp.ne.s32.totalorder %s103, 0
      %p105 = scmp.lt.s32.totalorder %s103, 0
      %p106 = pnand %p105, %p104
      %p107 = pneg %p106
      %s108 = sadd.s32 %s103, 2
      %s109 = scalar_select %p107, %s108, %s103
      %s110 = smul.u32 %s93, 128
      loop: start=0, step=1, limit=128
      $region53: #{tpu_custom_call.1} parent=51 // loop_pre_header
        _
      $region54: #{tpu_custom_call.1} parent=51 // loop_header
        %s112 = sphi 0, %s116
        %p113 = scmp.ge.s32.totalorder %s112, 128
      $region55: #{tpu_custom_call.1} parent=51 // loop_header_branch
        %115 = sbr.rel (%p113) target = $region59
      $region56: #{tpu_custom_call.1} parent=51 // loop_body
        %s117 = sadd.s32 %s110, %s112
        %s118 = sld [smem:[#allocation5 + %s117]]
        %s119 = smul.addr %s118, 16
        %s120 = scalar_lea.hbm %s1, %s119
        %s121 = smul.u32 %s109, 128
        %s122 = sadd.s32 %s112, %s121
        %s123 = scalar_lea.vmem [#allocation2], %s122
        %s124 = scalar_lea.sflag [#allocation3], %s109
        // Predicated region
        $region60: #{tpu_custom_call.1} parent=56 // pred_check
          _
        $region61: #{tpu_custom_call.1} parent=56 // pred_check_branch
          %126 = sbr.rel target = $region63
        $region62: #{tpu_custom_call.1} parent=56 // pred_region
          %127 = sst [smem:[#allocation15]] [#allocation18]
          %128 = sst [smem:[#allocation16]] [#allocation17]
        $region63: #{tpu_custom_call.1} parent=56 // pred_fallthru
          _
        %130 = shalt.err (0)
        %s132 = sshll.u32 %s123, 4
        %s133 = int_to_ptr.vmem [resolvable:$true] %s132
        %135 = dma.hbm_to_vmem [thread:$0]  %s120, 16, %s133, %s124
      $region57: #{tpu_custom_call.1} parent=51 // loop_footer
        %s116 = sadd.s32 1, %s112
      $region58: #{tpu_custom_call.1} parent=51 // loop_footer_branch
        %111 = sbr.rel target = $region54
      $region59: #{tpu_custom_call.1} parent=51 // loop_exit
        _
    $region52: #{tpu_custom_call.1} parent=1 // pred_fallthru
      _
    %s136 = ssub.s32 0, 0
    %s137 = ssub.s32 0, 0
    %p138 = scmp.ne.s32.totalorder 0, 0
    %p139 = scmp.lt.s32.totalorder 0, 0
    %p140 = pnand %p139, %p138
    %p141 = pneg %p140
    %s142 = sadd.s32 0, 2
    %s143 = scalar_select %p141, %s142, 0
    loop: start=0, step=1, limit=128
    $region64: #{tpu_custom_call.1} parent=1 // loop_pre_header
      _
    $region65: #{tpu_custom_call.1} parent=1 // loop_header
      %s145 = sphi 0, %s149
      %p146 = scmp.ge.s32.totalorder %s145, 128
    $region66: #{tpu_custom_call.1} parent=1 // loop_header_branch
      %148 = sbr.rel (%p146) target = $region70
    $region67: #{tpu_custom_call.1} parent=1 // loop_body
      %s150 = scalar_lea.sflag [#allocation3], %s143
      %s151 = smul.u32 1, 1
      %s152 = sshll.u32 %s151, 4
      %153 = dma.done %s150, %s152
    $region68: #{tpu_custom_call.1} parent=1 // loop_footer
      %s149 = sadd.s32 1, %s145
    $region69: #{tpu_custom_call.1} parent=1 // loop_footer_branch
      %144 = sbr.rel target = $region65
    $region70: #{tpu_custom_call.1} parent=1 // loop_exit
      _
    %s154 = smul.u32 %s143, 128
    %s155 = scalar_lea.vmem [#allocation2], %s154
    %v156 = vld [vmem:[%s155] sm:$0xff]
    %v157 = vld [vmem:[%s155 + $0x8] sm:$0xff]
    %v158 = vld [vmem:[%s155 + $0x10] sm:$0xff]
    %v159 = vld [vmem:[%s155 + $0x18] sm:$0xff]
    %v160 = vld [vmem:[%s155 + $0x20] sm:$0xff]
    %v161 = vld [vmem:[%s155 + $0x28] sm:$0xff]
    %v162 = vld [vmem:[%s155 + $0x30] sm:$0xff]
    %v163 = vld [vmem:[%s155 + $0x38] sm:$0xff]
    %v164 = vld [vmem:[%s155 + $0x40] sm:$0xff]
    %v165 = vld [vmem:[%s155 + $0x48] sm:$0xff]
    %v166 = vld [vmem:[%s155 + $0x50] sm:$0xff]
    %v167 = vld [vmem:[%s155 + $0x58] sm:$0xff]
    %v168 = vld [vmem:[%s155 + $0x60] sm:$0xff]
    %v169 = vld [vmem:[%s155 + $0x68] sm:$0xff]
    %v170 = vld [vmem:[%s155 + $0x70] sm:$0xff]
    %v171 = vld [vmem:[%s155 + $0x78] sm:$0xff]
    %v172 = vld [vmem:[#allocation6] sm:$0xff]
    %v173 = vld [vmem:[#allocation6 + $0x8] sm:$0xff]
    %v174 = vld [vmem:[#allocation6 + $0x10] sm:$0xff]
    %v175 = vld [vmem:[#allocation6 + $0x18] sm:$0xff]
    %v176 = vld [vmem:[#allocation6 + $0x20] sm:$0xff]
    %v177 = vld [vmem:[#allocation6 + $0x28] sm:$0xff]
    %v178 = vld [vmem:[#allocation6 + $0x30] sm:$0xff]
    %v179 = vld [vmem:[#allocation6 + $0x38] sm:$0xff]
    %v180 = vld [vmem:[#allocation6 + $0x40] sm:$0xff]
    %v181 = vld [vmem:[#allocation6 + $0x48] sm:$0xff]
    %v182 = vld [vmem:[#allocation6 + $0x50] sm:$0xff]
    %v183 = vld [vmem:[#allocation6 + $0x58] sm:$0xff]
    %v184 = vld [vmem:[#allocation6 + $0x60] sm:$0xff]
    %v185 = vld [vmem:[#allocation6 + $0x68] sm:$0xff]
    %v186 = vld [vmem:[#allocation6 + $0x70] sm:$0xff]
    %v187 = vld [vmem:[#allocation6 + $0x78] sm:$0xff]
    %188 = vmatprep.subr.mxu0 0.0
    %189 = vmatpush1.msra.mxu0 %v187
    %190 = vmatprep.subr.mxu0 0.0
    %191 = vmatpush1.msra.mxu0 %v186
    %192 = vmatprep.subr.mxu0 0.0
    %193 = vmatpush1.msra.mxu0 %v185
    %194 = vmatprep.subr.mxu0 0.0
    %195 = vmatpush1.msra.mxu0 %v184
    %196 = vmatprep.subr.mxu0 0.0
    %197 = vmatpush1.msra.mxu0 %v183
    %198 = vmatprep.subr.mxu0 0.0
    %199 = vmatpush1.msra.mxu0 %v182
    %200 = vmatprep.subr.mxu0 0.0
    %201 = vmatpush1.msra.mxu0 %v181
    %202 = vmatprep.subr.mxu0 0.0
    %203 = vmatpush1.msra.mxu0 %v180
    %204 = vmatprep.subr.mxu0 0.0
    %205 = vmatpush1.msra.mxu0 %v179
    %206 = vmatprep.subr.mxu0 0.0
    %207 = vmatpush1.msra.mxu0 %v178
    %208 = vmatprep.subr.mxu0 0.0
    %209 = vmatpush1.msra.mxu0 %v177
    %210 = vmatprep.subr.mxu0 0.0
    %211 = vmatpush1.msra.mxu0 %v176
    %212 = vmatprep.subr.mxu0 0.0
    %213 = vmatpush1.msra.mxu0 %v175
    %214 = vmatprep.subr.mxu0 0.0
    %215 = vmatpush1.msra.mxu0 %v174
    %216 = vmatprep.subr.mxu0 0.0
    %217 = vmatpush1.msra.mxu0 %v173
    %218 = vmatprep.subr.mxu0 0.0
    %219 = vmatpush1.msra.mxu0 %v172
    %220 = vmatprep.subr.mxu0 0.0
    %221 = vmatpush2.msra.mxu0 0.0
    %222 = vmatprep.subr.mxu0 0.0
    %223 = vmatpush2.msra.mxu0 0.0
    %224 = vmatprep.subr.mxu0 0.0
    %225 = vmatpush2.msra.mxu0 0.0
    %226 = vmatprep.subr.mxu0 0.0
    %227 = vmatpush2.msra.mxu0 0.0
    %228 = vmatprep.subr.mxu0 0.0
    %229 = vmatpush2.msra.mxu0 0.0
    %230 = vmatprep.subr.mxu0 0.0
    %231 = vmatpush2.msra.mxu0 0.0
    %232 = vmatprep.subr.mxu0 0.0
    %233 = vmatpush2.msra.mxu0 0.0
    %234 = vmatprep.subr.mxu0 0.0
    %235 = vmatpush2.msra.mxu0 0.0
    %236 = vmatprep.subr.mxu0 0.0
    %237 = vmatpush2.msra.mxu0 0.0
    %238 = vmatprep.subr.mxu0 0.0
    %239 = vmatpush2.msra.mxu0 0.0
    %240 = vmatprep.subr.mxu0 0.0
    %241 = vmatpush2.msra.mxu0 0.0
    %242 = vmatprep.subr.mxu0 0.0
    %243 = vmatpush2.msra.mxu0 0.0
    %244 = vmatprep.subr.mxu0 0.0
    %245 = vmatpush2.msra.mxu0 0.0
    %246 = vmatprep.subr.mxu0 0.0
    %247 = vmatpush2.msra.mxu0 0.0
    %248 = vmatprep.subr.mxu0 0.0
    %249 = vmatpush2.msra.mxu0 0.0
    %250 = vmatprep.subr.mxu0 0.0
    %251 = vmatpush2.msra.mxu0 0.0
    %252 = vmatprep.mubr.f32.mxu0 0.0
    %253 = vmatmul.mubr.f32.gmra.mxu0 %v156
    %v254 = vpop.f32.mrf.mxu0
    %v255 = vadd.f32 0.0, %v254
    %v256 = vpop.f32.mrf.mxu0
    %257 = vmatprep.mubr.f32.mxu0 0.0
    %258 = vmatmul.mubr.f32.gmra.mxu0 %v157
    %v259 = vpop.f32.mrf.mxu0
    %v260 = vadd.f32 0.0, %v259
    %v261 = vpop.f32.mrf.mxu0
    %262 = vmatprep.mubr.f32.mxu0 0.0
    %263 = vmatmul.mubr.f32.gmra.mxu0 %v158
    %v264 = vpop.f32.mrf.mxu0
    %v265 = vadd.f32 0.0, %v264
    %v266 = vpop.f32.mrf.mxu0
    %267 = vmatprep.mubr.f32.mxu0 0.0
    %268 = vmatmul.mubr.f32.gmra.mxu0 %v159
    %v269 = vpop.f32.mrf.mxu0
    %v270 = vadd.f32 0.0, %v269
    %v271 = vpop.f32.mrf.mxu0
    %272 = vmatprep.mubr.f32.mxu0 0.0
    %273 = vmatmul.mubr.f32.gmra.mxu0 %v160
    %v274 = vpop.f32.mrf.mxu0
    %v275 = vadd.f32 0.0, %v274
    %v276 = vpop.f32.mrf.mxu0
    %277 = vmatprep.mubr.f32.mxu0 0.0
    %278 = vmatmul.mubr.f32.gmra.mxu0 %v161
    %v279 = vpop.f32.mrf.mxu0
    %v280 = vadd.f32 0.0, %v279
    %v281 = vpop.f32.mrf.mxu0
    %282 = vmatprep.mubr.f32.mxu0 0.0
    %283 = vmatmul.mubr.f32.gmra.mxu0 %v162
    %v284 = vpop.f32.mrf.mxu0
    %v285 = vadd.f32 0.0, %v284
    %v286 = vpop.f32.mrf.mxu0
    %287 = vmatprep.mubr.f32.mxu0 0.0
    %288 = vmatmul.mubr.f32.gmra.mxu0 %v163
    %v289 = vpop.f32.mrf.mxu0
    %v290 = vadd.f32 0.0, %v289
    %v291 = vpop.f32.mrf.mxu0
    %292 = vmatprep.mubr.f32.mxu0 0.0
    %293 = vmatmul.mubr.f32.gmra.mxu0 %v164
    %v294 = vpop.f32.mrf.mxu0
    %v295 = vadd.f32 0.0, %v294
    %v296 = vpop.f32.mrf.mxu0
    %297 = vmatprep.mubr.f32.mxu0 0.0
    %298 = vmatmul.mubr.f32.gmra.mxu0 %v165
    %v299 = vpop.f32.mrf.mxu0
    %v300 = vadd.f32 0.0, %v299
    %v301 = vpop.f32.mrf.mxu0
    %302 = vmatprep.mubr.f32.mxu0 0.0
    %303 = vmatmul.mubr.f32.gmra.mxu0 %v166
    %v304 = vpop.f32.mrf.mxu0
    %v305 = vadd.f32 0.0, %v304
    %v306 = vpop.f32.mrf.mxu0
    %307 = vmatprep.mubr.f32.mxu0 0.0
    %308 = vmatmul.mubr.f32.gmra.mxu0 %v167
    %v309 = vpop.f32.mrf.mxu0
    %v310 = vadd.f32 0.0, %v309
    %v311 = vpop.f32.mrf.mxu0
    %312 = vmatprep.mubr.f32.mxu0 0.0
    %313 = vmatmul.mubr.f32.gmra.mxu0 %v168
    %v314 = vpop.f32.mrf.mxu0
    %v315 = vadd.f32 0.0, %v314
    %v316 = vpop.f32.mrf.mxu0
    %317 = vmatprep.mubr.f32.mxu0 0.0
    %318 = vmatmul.mubr.f32.gmra.mxu0 %v169
    %v319 = vpop.f32.mrf.mxu0
    %v320 = vadd.f32 0.0, %v319
    %v321 = vpop.f32.mrf.mxu0
    %322 = vmatprep.mubr.f32.mxu0 0.0
    %323 = vmatmul.mubr.f32.gmra.mxu0 %v170
    %v324 = vpop.f32.mrf.mxu0
    %v325 = vadd.f32 0.0, %v324
    %v326 = vpop.f32.mrf.mxu0
    %327 = vmatprep.mubr.f32.mxu0 0.0
    %328 = vmatmul.mubr.f32.gmra.mxu0 %v171
    %v329 = vpop.f32.mrf.mxu0
    %v330 = vadd.f32 0.0, %v329
    %v331 = vpop.f32.mrf.mxu0
    %332 = vdwg.mxu0
    %v333 = vld [vmem:[#allocation9] sm:$0xff]
    %v334 = vld [vmem:[#allocation9 + $0x8] sm:$0xff]
    %v335 = vld [vmem:[#allocation9 + $0x10] sm:$0xff]
    %v336 = vld [vmem:[#allocation9 + $0x18] sm:$0xff]
    %v337 = vld [vmem:[#allocation9 + $0x20] sm:$0xff]
    %v338 = vld [vmem:[#allocation9 + $0x28] sm:$0xff]
    %v339 = vld [vmem:[#allocation9 + $0x30] sm:$0xff]
    %v340 = vld [vmem:[#allocation9 + $0x38] sm:$0xff]
    %v341 = vld [vmem:[#allocation9 + $0x40] sm:$0xff]
    %v342 = vld [vmem:[#allocation9 + $0x48] sm:$0xff]
    %v343 = vld [vmem:[#allocation9 + $0x50] sm:$0xff]
    %v344 = vld [vmem:[#allocation9 + $0x58] sm:$0xff]
    %v345 = vld [vmem:[#allocation9 + $0x60] sm:$0xff]
    %v346 = vld [vmem:[#allocation9 + $0x68] sm:$0xff]
    %v347 = vld [vmem:[#allocation9 + $0x70] sm:$0xff]
    %v348 = vld [vmem:[#allocation9 + $0x78] sm:$0xff]
    %v349 = vld [vmem:[#allocation9 + $0x80] sm:$0xff]
    %v350 = vld [vmem:[#allocation9 + $0x88] sm:$0xff]
    %v351 = vld [vmem:[#allocation9 + $0x90] sm:$0xff]
    %v352 = vld [vmem:[#allocation9 + $0x98] sm:$0xff]
    %v353 = vld [vmem:[#allocation9 + $0xa0] sm:$0xff]
    %v354 = vld [vmem:[#allocation9 + $0xa8] sm:$0xff]
    %v355 = vld [vmem:[#allocation9 + $0xb0] sm:$0xff]
    %v356 = vld [vmem:[#allocation9 + $0xb8] sm:$0xff]
    %v357 = vld [vmem:[#allocation9 + $0xc0] sm:$0xff]
    %v358 = vld [vmem:[#allocation9 + $0xc8] sm:$0xff]
    %v359 = vld [vmem:[#allocation9 + $0xd0] sm:$0xff]
    %v360 = vld [vmem:[#allocation9 + $0xd8] sm:$0xff]
    %v361 = vld [vmem:[#allocation9 + $0xe0] sm:$0xff]
    %v362 = vld [vmem:[#allocation9 + $0xe8] sm:$0xff]
    %v363 = vld [vmem:[#allocation9 + $0xf0] sm:$0xff]
    %v364 = vld [vmem:[#allocation9 + $0xf8] sm:$0xff]
    %v365 = vld [vmem:[%s4] sm:$0x3]
    %v367 = vlaneseq
    %v368 = vshrl.u32 %v367, 7
    %v369 = vsub.s32 0, %v368
    %v370 = vrot.slane %v365, %v369
    %v371 = vlaneseq
    %v372 = vshrl.u32 %v371, 7
    %v373 = vsub.s32 1, %v372
    %v374 = vrot.slane %v365, %v373
    %377 = vmatprep.subr.mxu0 %v364
    %378 = vmatpush1.msra.mxu0 %v363
    %379 = vmatprep.subr.mxu0 %v362
    %380 = vmatpush1.msra.mxu0 %v361
    %381 = vmatprep.subr.mxu0 %v360
    %382 = vmatpush1.msra.mxu0 %v359
    %383 = vmatprep.subr.mxu0 %v358
    %384 = vmatpush1.msra.mxu0 %v357
    %385 = vmatprep.subr.mxu0 %v356
    %386 = vmatpush1.msra.mxu0 %v355
    %387 = vmatprep.subr.mxu0 %v354
    %388 = vmatpush1.msra.mxu0 %v353
    %389 = vmatprep.subr.mxu0 %v352
    %390 = vmatpush1.msra.mxu0 %v351
    %391 = vmatprep.subr.mxu0 %v350
    %392 = vmatpush1.msra.mxu0 %v349
    %393 = vmatprep.subr.mxu0 %v348
    %394 = vmatpush1.msra.mxu0 %v347
    %395 = vmatprep.subr.mxu0 %v346
    %396 = vmatpush1.msra.mxu0 %v345
    %397 = vmatprep.subr.mxu0 %v344
    %398 = vmatpush1.msra.mxu0 %v343
    %399 = vmatprep.subr.mxu0 %v342
    %400 = vmatpush1.msra.mxu0 %v341
    %401 = vmatprep.subr.mxu0 %v340
    %402 = vmatpush1.msra.mxu0 %v339
    %403 = vmatprep.subr.mxu0 %v338
    %404 = vmatpush1.msra.mxu0 %v337
    %405 = vmatprep.subr.mxu0 %v336
    %406 = vmatpush1.msra.mxu0 %v335
    %407 = vmatprep.subr.mxu0 %v334
    %408 = vmatpush1.msra.mxu0 %v333
    %409 = vmatprep.subr.mxu0 0.0
    %410 = vmatpush2.msra.mxu0 0.0
    %411 = vmatprep.subr.mxu0 0.0
    %412 = vmatpush2.msra.mxu0 0.0
    %413 = vmatprep.subr.mxu0 0.0
    %414 = vmatpush2.msra.mxu0 0.0
    %415 = vmatprep.subr.mxu0 0.0
    %416 = vmatpush2.msra.mxu0 0.0
    %417 = vmatprep.subr.mxu0 0.0
    %418 = vmatpush2.msra.mxu0 0.0
    %419 = vmatprep.subr.mxu0 0.0
    %420 = vmatpush2.msra.mxu0 0.0
    %421 = vmatprep.subr.mxu0 0.0
    %422 = vmatpush2.msra.mxu0 0.0
    %423 = vmatprep.subr.mxu0 0.0
    %424 = vmatpush2.msra.mxu0 0.0
    %425 = vmatprep.subr.mxu0 0.0
    %426 = vmatpush2.msra.mxu0 0.0
    %427 = vmatprep.subr.mxu0 0.0
    %428 = vmatpush2.msra.mxu0 0.0
    %429 = vmatprep.subr.mxu0 0.0
    %430 = vmatpush2.msra.mxu0 0.0
    %431 = vmatprep.subr.mxu0 0.0
    %432 = vmatpush2.msra.mxu0 0.0
    %433 = vmatprep.subr.mxu0 0.0
    %434 = vmatpush2.msra.mxu0 0.0
    %435 = vmatprep.subr.mxu0 0.0
    %436 = vmatpush2.msra.mxu0 0.0
    %437 = vmatprep.subr.mxu0 0.0
    %438 = vmatpush2.msra.mxu0 0.0
    %439 = vmatprep.subr.mxu0 0.0
    %440 = vmatpush2.msra.mxu0 0.0
    %441 = vmatprep.mubr.f32.mxu0 0.0
    %442 = vmatmul.mubr.f32.gmra.mxu0 %v255
    %v443 = vpop.f32.mrf.mxu0
    %v444 = vadd.f32 %v370, %v443
    %v445 = vpop.f32.mrf.mxu0
    %v446 = vadd.f32 %v374, %v445
    %447 = vmatprep.mubr.f32.mxu0 0.0
    %448 = vmatmul.mubr.f32.gmra.mxu0 %v260
    %v449 = vpop.f32.mrf.mxu0
    %v450 = vadd.f32 %v370, %v449
    %v451 = vpop.f32.mrf.mxu0
    %v452 = vadd.f32 %v374, %v451
    %453 = vmatprep.mubr.f32.mxu0 0.0
    %454 = vmatmul.mubr.f32.gmra.mxu0 %v265
    %v455 = vpop.f32.mrf.mxu0
    %v456 = vadd.f32 %v370, %v455
    %v457 = vpop.f32.mrf.mxu0
    %v458 = vadd.f32 %v374, %v457
    %459 = vmatprep.mubr.f32.mxu0 0.0
    %460 = vmatmul.mubr.f32.gmra.mxu0 %v270
    %v461 = vpop.f32.mrf.mxu0
    %v462 = vadd.f32 %v370, %v461
    %v463 = vpop.f32.mrf.mxu0
    %v464 = vadd.f32 %v374, %v463
    %465 = vmatprep.mubr.f32.mxu0 0.0
    %466 = vmatmul.mubr.f32.gmra.mxu0 %v275
    %v467 = vpop.f32.mrf.mxu0
    %v468 = vadd.f32 %v370, %v467
    %v469 = vpop.f32.mrf.mxu0
    %v470 = vadd.f32 %v374, %v469
    %471 = vmatprep.mubr.f32.mxu0 0.0
    %472 = vmatmul.mubr.f32.gmra.mxu0 %v280
    %v473 = vpop.f32.mrf.mxu0
    %v474 = vadd.f32 %v370, %v473
    %v475 = vpop.f32.mrf.mxu0
    %v476 = vadd.f32 %v374, %v475
    %477 = vmatprep.mubr.f32.mxu0 0.0
    %478 = vmatmul.mubr.f32.gmra.mxu0 %v285
    %v479 = vpop.f32.mrf.mxu0
    %v480 = vadd.f32 %v370, %v479
    %v481 = vpop.f32.mrf.mxu0
    %v482 = vadd.f32 %v374, %v481
    %483 = vmatprep.mubr.f32.mxu0 0.0
    %484 = vmatmul.mubr.f32.gmra.mxu0 %v290
    %v485 = vpop.f32.mrf.mxu0
    %v486 = vadd.f32 %v370, %v485
    %v487 = vpop.f32.mrf.mxu0
    %v488 = vadd.f32 %v374, %v487
    %489 = vmatprep.mubr.f32.mxu0 0.0
    %490 = vmatmul.mubr.f32.gmra.mxu0 %v295
    %v491 = vpop.f32.mrf.mxu0
    %v492 = vadd.f32 %v370, %v491
    %v493 = vpop.f32.mrf.mxu0
    %v494 = vadd.f32 %v374, %v493
    %495 = vmatprep.mubr.f32.mxu0 0.0
    %496 = vmatmul.mubr.f32.gmra.mxu0 %v300
    %v497 = vpop.f32.mrf.mxu0
    %v498 = vadd.f32 %v370, %v497
    %v499 = vpop.f32.mrf.mxu0
    %v500 = vadd.f32 %v374, %v499
    %501 = vmatprep.mubr.f32.mxu0 0.0
    %502 = vmatmul.mubr.f32.gmra.mxu0 %v305
    %v503 = vpop.f32.mrf.mxu0
    %v504 = vadd.f32 %v370, %v503
    %v505 = vpop.f32.mrf.mxu0
    %v506 = vadd.f32 %v374, %v505
    %507 = vmatprep.mubr.f32.mxu0 0.0
    %508 = vmatmul.mubr.f32.gmra.mxu0 %v310
    %v509 = vpop.f32.mrf.mxu0
    %v510 = vadd.f32 %v370, %v509
    %v511 = vpop.f32.mrf.mxu0
    %v512 = vadd.f32 %v374, %v511
    %513 = vmatprep.mubr.f32.mxu0 0.0
    %514 = vmatmul.mubr.f32.gmra.mxu0 %v315
    %v515 = vpop.f32.mrf.mxu0
    %v516 = vadd.f32 %v370, %v515
    %v517 = vpop.f32.mrf.mxu0
    %v518 = vadd.f32 %v374, %v517
    %519 = vmatprep.mubr.f32.mxu0 0.0
    %520 = vmatmul.mubr.f32.gmra.mxu0 %v320
    %v521 = vpop.f32.mrf.mxu0
    %v522 = vadd.f32 %v370, %v521
    %v523 = vpop.f32.mrf.mxu0
    %v524 = vadd.f32 %v374, %v523
    %525 = vmatprep.mubr.f32.mxu0 0.0
    %526 = vmatmul.mubr.f32.gmra.mxu0 %v325
    %v527 = vpop.f32.mrf.mxu0
    %v528 = vadd.f32 %v370, %v527
    %v529 = vpop.f32.mrf.mxu0
    %v530 = vadd.f32 %v374, %v529
    %531 = vmatprep.mubr.f32.mxu0 0.0
    %532 = vmatmul.mubr.f32.gmra.mxu0 %v330
    %v533 = vpop.f32.mrf.mxu0
    %v534 = vadd.f32 %v370, %v533
    %v535 = vpop.f32.mrf.mxu0
    %v536 = vadd.f32 %v374, %v535
    %537 = vdwg.mxu0
    %v538 = vmax.f32 %v444, 0.0
    %v539 = vmax.f32 %v450, 0.0
    %v540 = vmax.f32 %v456, 0.0
    %v541 = vmax.f32 %v462, 0.0
    %v542 = vmax.f32 %v468, 0.0
    %v543 = vmax.f32 %v474, 0.0
    %v544 = vmax.f32 %v480, 0.0
    %v545 = vmax.f32 %v486, 0.0
    %v546 = vmax.f32 %v492, 0.0
    %v547 = vmax.f32 %v498, 0.0
    %v548 = vmax.f32 %v504, 0.0
    %v549 = vmax.f32 %v510, 0.0
    %v550 = vmax.f32 %v516, 0.0
    %v551 = vmax.f32 %v522, 0.0
    %v552 = vmax.f32 %v528, 0.0
    %v553 = vmax.f32 %v534, 0.0
    %v554 = vxor.u32 %v446, 2147483648
    %v555 = vxor.u32 %v452, 2147483648
    %v556 = vxor.u32 %v458, 2147483648
    %v557 = vxor.u32 %v464, 2147483648
    %v558 = vxor.u32 %v470, 2147483648
    %v559 = vxor.u32 %v476, 2147483648
    %v560 = vxor.u32 %v482, 2147483648
    %v561 = vxor.u32 %v488, 2147483648
    %v562 = vxor.u32 %v494, 2147483648
    %v563 = vxor.u32 %v500, 2147483648
    %v564 = vxor.u32 %v506, 2147483648
    %v565 = vxor.u32 %v512, 2147483648
    %v566 = vxor.u32 %v518, 2147483648
    %v567 = vxor.u32 %v524, 2147483648
    %v568 = vxor.u32 %v530, 2147483648
    %v569 = vxor.u32 %v536, 2147483648
    %v570 = vmul.f32 %v554, 1.442695
    %v571 = vpow.pop %v570
    %v572 = vmul.f32 %v555, 1.442695
    %v573 = vpow.pop %v572
    %v574 = vmul.f32 %v556, 1.442695
    %v575 = vpow.pop %v574
    %v576 = vmul.f32 %v557, 1.442695
    %v577 = vpow.pop %v576
    %v578 = vmul.f32 %v558, 1.442695
    %v579 = vpow.pop %v578
    %v580 = vmul.f32 %v559, 1.442695
    %v581 = vpow.pop %v580
    %v582 = vmul.f32 %v560, 1.442695
    %v583 = vpow.pop %v582
    %v584 = vmul.f32 %v561, 1.442695
    %v585 = vpow.pop %v584
    %v586 = vmul.f32 %v562, 1.442695
    %v587 = vpow.pop %v586
    %v588 = vmul.f32 %v563, 1.442695
    %v589 = vpow.pop %v588
    %v590 = vmul.f32 %v564, 1.442695
    %v591 = vpow.pop %v590
    %v592 = vmul.f32 %v565, 1.442695
    %v593 = vpow.pop %v592
    %v594 = vmul.f32 %v566, 1.442695
    %v595 = vpow.pop %v594
    %v596 = vmul.f32 %v567, 1.442695
    %v597 = vpow.pop %v596
    %v598 = vmul.f32 %v568, 1.442695
    %v599 = vpow.pop %v598
    %v600 = vmul.f32 %v569, 1.442695
    %v601 = vpow.pop %v600
    %v602 = vadd.f32 %v571, 1.0
    %v603 = vadd.f32 %v573, 1.0
    %v604 = vadd.f32 %v575, 1.0
    %v605 = vadd.f32 %v577, 1.0
    %v606 = vadd.f32 %v579, 1.0
    %v607 = vadd.f32 %v581, 1.0
    %v608 = vadd.f32 %v583, 1.0
    %v609 = vadd.f32 %v585, 1.0
    %v610 = vadd.f32 %v587, 1.0
    %v611 = vadd.f32 %v589, 1.0
    %v612 = vadd.f32 %v591, 1.0
    %v613 = vadd.f32 %v593, 1.0
    %v614 = vadd.f32 %v595, 1.0
    %v615 = vadd.f32 %v597, 1.0
    %v616 = vadd.f32 %v599, 1.0
    %v617 = vadd.f32 %v601, 1.0
    %v618 = vrcp.pop %v602
    %v619 = vmul.f32 1.0, %v618
    %v620 = vrcp.pop %v603
    %v621 = vmul.f32 1.0, %v620
    %v622 = vrcp.pop %v604
    %v623 = vmul.f32 1.0, %v622
    %v624 = vrcp.pop %v605
    %v625 = vmul.f32 1.0, %v624
    %v626 = vrcp.pop %v606
    %v627 = vmul.f32 1.0, %v626
    %v628 = vrcp.pop %v607
    %v629 = vmul.f32 1.0, %v628
    %v630 = vrcp.pop %v608
    %v631 = vmul.f32 1.0, %v630
    %v632 = vrcp.pop %v609
    %v633 = vmul.f32 1.0, %v632
    %v634 = vrcp.pop %v610
    %v635 = vmul.f32 1.0, %v634
    %v636 = vrcp.pop %v611
    %v637 = vmul.f32 1.0, %v636
    %v638 = vrcp.pop %v612
    %v639 = vmul.f32 1.0, %v638
    %v640 = vrcp.pop %v613
    %v641 = vmul.f32 1.0, %v640
    %v642 = vrcp.pop %v614
    %v643 = vmul.f32 1.0, %v642
    %v644 = vrcp.pop %v615
    %v645 = vmul.f32 1.0, %v644
    %v646 = vrcp.pop %v616
    %v647 = vmul.f32 1.0, %v646
    %v648 = vrcp.pop %v617
    %v649 = vmul.f32 1.0, %v648
    %v650 = vsub.f32 %v538, %v255
    %v651 = vsub.f32 %v539, %v260
    %v652 = vsub.f32 %v540, %v265
    %v653 = vsub.f32 %v541, %v270
    %v654 = vsub.f32 %v542, %v275
    %v655 = vsub.f32 %v543, %v280
    %v656 = vsub.f32 %v544, %v285
    %v657 = vsub.f32 %v545, %v290
    %v658 = vsub.f32 %v546, %v295
    %v659 = vsub.f32 %v547, %v300
    %v660 = vsub.f32 %v548, %v305
    %v661 = vsub.f32 %v549, %v310
    %v662 = vsub.f32 %v550, %v315
    %v663 = vsub.f32 %v551, %v320
    %v664 = vsub.f32 %v552, %v325
    %v665 = vsub.f32 %v553, %v330
    %v666 = vmul.f32 %v619, %v650
    %v667 = vmul.f32 %v621, %v651
    %v668 = vmul.f32 %v623, %v652
    %v669 = vmul.f32 %v625, %v653
    %v670 = vmul.f32 %v627, %v654
    %v671 = vmul.f32 %v629, %v655
    %v672 = vmul.f32 %v631, %v656
    %v673 = vmul.f32 %v633, %v657
    %v674 = vmul.f32 %v635, %v658
    %v675 = vmul.f32 %v637, %v659
    %v676 = vmul.f32 %v639, %v660
    %v677 = vmul.f32 %v641, %v661
    %v678 = vmul.f32 %v643, %v662
    %v679 = vmul.f32 %v645, %v663
    %v680 = vmul.f32 %v647, %v664
    %v681 = vmul.f32 %v649, %v665
    %v682 = vadd.f32 %v255, %v666
    %v683 = vadd.f32 %v260, %v667
    %v684 = vadd.f32 %v265, %v668
    %v685 = vadd.f32 %v270, %v669
    %v686 = vadd.f32 %v275, %v670
    %v687 = vadd.f32 %v280, %v671
    %v688 = vadd.f32 %v285, %v672
    %v689 = vadd.f32 %v290, %v673
    %v690 = vadd.f32 %v295, %v674
    %v691 = vadd.f32 %v300, %v675
    %v692 = vadd.f32 %v305, %v676
    %v693 = vadd.f32 %v310, %v677
    %v694 = vadd.f32 %v315, %v678
    %v695 = vadd.f32 %v320, %v679
    %v696 = vadd.f32 %v325, %v680
    %v697 = vadd.f32 %v330, %v681
    %v698 = vld [vmem:[#allocation11] sm:$0xff]
    %v699 = vld [vmem:[#allocation11 + $0x8] sm:$0xff]
    %v700 = vld [vmem:[#allocation11 + $0x10] sm:$0xff]
    %v701 = vld [vmem:[#allocation11 + $0x18] sm:$0xff]
    %v702 = vld [vmem:[#allocation11 + $0x20] sm:$0xff]
    %v703 = vld [vmem:[#allocation11 + $0x28] sm:$0xff]
    %v704 = vld [vmem:[#allocation11 + $0x30] sm:$0xff]
    %v705 = vld [vmem:[#allocation11 + $0x38] sm:$0xff]
    %v706 = vld [vmem:[#allocation11 + $0x40] sm:$0xff]
    %v707 = vld [vmem:[#allocation11 + $0x48] sm:$0xff]
    %v708 = vld [vmem:[#allocation11 + $0x50] sm:$0xff]
    %v709 = vld [vmem:[#allocation11 + $0x58] sm:$0xff]
    %v710 = vld [vmem:[#allocation11 + $0x60] sm:$0xff]
    %v711 = vld [vmem:[#allocation11 + $0x68] sm:$0xff]
    %v712 = vld [vmem:[#allocation11 + $0x70] sm:$0xff]
    %v713 = vld [vmem:[#allocation11 + $0x78] sm:$0xff]
    %v714 = vld [vmem:[#allocation11 + $0x80] sm:$0xff]
    %v715 = vld [vmem:[#allocation11 + $0x88] sm:$0xff]
    %v716 = vld [vmem:[#allocation11 + $0x90] sm:$0xff]
    %v717 = vld [vmem:[#allocation11 + $0x98] sm:$0xff]
    %v718 = vld [vmem:[#allocation11 + $0xa0] sm:$0xff]
    %v719 = vld [vmem:[#allocation11 + $0xa8] sm:$0xff]
    %v720 = vld [vmem:[#allocation11 + $0xb0] sm:$0xff]
    %v721 = vld [vmem:[#allocation11 + $0xb8] sm:$0xff]
    %v722 = vld [vmem:[#allocation11 + $0xc0] sm:$0xff]
    %v723 = vld [vmem:[#allocation11 + $0xc8] sm:$0xff]
    %v724 = vld [vmem:[#allocation11 + $0xd0] sm:$0xff]
    %v725 = vld [vmem:[#allocation11 + $0xd8] sm:$0xff]
    %v726 = vld [vmem:[#allocation11 + $0xe0] sm:$0xff]
    %v727 = vld [vmem:[#allocation11 + $0xe8] sm:$0xff]
    %v728 = vld [vmem:[#allocation11 + $0xf0] sm:$0xff]
    %v729 = vld [vmem:[#allocation11 + $0xf8] sm:$0xff]
    %v730 = vld [vmem:[%s6] sm:$0x3]
    %v732 = vlaneseq
    %v733 = vshrl.u32 %v732, 7
    %v734 = vsub.s32 0, %v733
    %v735 = vrot.slane %v730, %v734
    %v736 = vlaneseq
    %v737 = vshrl.u32 %v736, 7
    %v738 = vsub.s32 1, %v737
    %v739 = vrot.slane %v730, %v738
    %742 = vmatprep.subr.mxu0 %v729
    %743 = vmatpush1.msra.mxu0 %v728
    %744 = vmatprep.subr.mxu0 %v727
    %745 = vmatpush1.msra.mxu0 %v726
    %746 = vmatprep.subr.mxu0 %v725
    %747 = vmatpush1.msra.mxu0 %v724
    %748 = vmatprep.subr.mxu0 %v723
    %749 = vmatpush1.msra.mxu0 %v722
    %750 = vmatprep.subr.mxu0 %v721
    %751 = vmatpush1.msra.mxu0 %v720
    %752 = vmatprep.subr.mxu0 %v719
    %753 = vmatpush1.msra.mxu0 %v718
    %754 = vmatprep.subr.mxu0 %v717
    %755 = vmatpush1.msra.mxu0 %v716
    %756 = vmatprep.subr.mxu0 %v715
    %757 = vmatpush1.msra.mxu0 %v714
    %758 = vmatprep.subr.mxu0 %v713
    %759 = vmatpush1.msra.mxu0 %v712
    %760 = vmatprep.subr.mxu0 %v711
    %761 = vmatpush1.msra.mxu0 %v710
    %762 = vmatprep.subr.mxu0 %v709
    %763 = vmatpush1.msra.mxu0 %v708
    %764 = vmatprep.subr.mxu0 %v707
    %765 = vmatpush1.msra.mxu0 %v706
    %766 = vmatprep.subr.mxu0 %v705
    %767 = vmatpush1.msra.mxu0 %v704
    %768 = vmatprep.subr.mxu0 %v703
    %769 = vmatpush1.msra.mxu0 %v702
    %770 = vmatprep.subr.mxu0 %v701
    %771 = vmatpush1.msra.mxu0 %v700
    %772 = vmatprep.subr.mxu0 %v699
    %773 = vmatpush1.msra.mxu0 %v698
    %774 = vmatprep.subr.mxu0 0.0
    %775 = vmatpush2.msra.mxu0 0.0
    %776 = vmatprep.subr.mxu0 0.0
    %777 = vmatpush2.msra.mxu0 0.0
    %778 = vmatprep.subr.mxu0 0.0
    %779 = vmatpush2.msra.mxu0 0.0
    %780 = vmatprep.subr.mxu0 0.0
    %781 = vmatpush2.msra.mxu0 0.0
    %782 = vmatprep.subr.mxu0 0.0
    %783 = vmatpush2.msra.mxu0 0.0
    %784 = vmatprep.subr.mxu0 0.0
    %785 = vmatpush2.msra.mxu0 0.0
    %786 = vmatprep.subr.mxu0 0.0
    %787 = vmatpush2.msra.mxu0 0.0
    %788 = vmatprep.subr.mxu0 0.0
    %789 = vmatpush2.msra.mxu0 0.0
    %790 = vmatprep.subr.mxu0 0.0
    %791 = vmatpush2.msra.mxu0 0.0
    %792 = vmatprep.subr.mxu0 0.0
    %793 = vmatpush2.msra.mxu0 0.0
    %794 = vmatprep.subr.mxu0 0.0
    %795 = vmatpush2.msra.mxu0 0.0
    %796 = vmatprep.subr.mxu0 0.0
    %797 = vmatpush2.msra.mxu0 0.0
    %798 = vmatprep.subr.mxu0 0.0
    %799 = vmatpush2.msra.mxu0 0.0
    %800 = vmatprep.subr.mxu0 0.0
    %801 = vmatpush2.msra.mxu0 0.0
    %802 = vmatprep.subr.mxu0 0.0
    %803 = vmatpush2.msra.mxu0 0.0
    %804 = vmatprep.subr.mxu0 0.0
    %805 = vmatpush2.msra.mxu0 0.0
    %806 = vmatprep.mubr.f32.mxu0 0.0
    %807 = vmatmul.mubr.f32.gmra.mxu0 %v682
    %v808 = vpop.f32.mrf.mxu0
    %v809 = vadd.f32 %v735, %v808
    %v810 = vpop.f32.mrf.mxu0
    %v811 = vadd.f32 %v739, %v810
    %812 = vmatprep.mubr.f32.mxu0 0.0
    %813 = vmatmul.mubr.f32.gmra.mxu0 %v683
    %v814 = vpop.f32.mrf.mxu0
    %v815 = vadd.f32 %v735, %v814
    %v816 = vpop.f32.mrf.mxu0
    %v817 = vadd.f32 %v739, %v816
    %818 = vmatprep.mubr.f32.mxu0 0.0
    %819 = vmatmul.mubr.f32.gmra.mxu0 %v684
    %v820 = vpop.f32.mrf.mxu0
    %v821 = vadd.f32 %v735, %v820
    %v822 = vpop.f32.mrf.mxu0
    %v823 = vadd.f32 %v739, %v822
    %824 = vmatprep.mubr.f32.mxu0 0.0
    %825 = vmatmul.mubr.f32.gmra.mxu0 %v685
    %v826 = vpop.f32.mrf.mxu0
    %v827 = vadd.f32 %v735, %v826
    %v828 = vpop.f32.mrf.mxu0
    %v829 = vadd.f32 %v739, %v828
    %830 = vmatprep.mubr.f32.mxu0 0.0
    %831 = vmatmul.mubr.f32.gmra.mxu0 %v686
    %v832 = vpop.f32.mrf.mxu0
    %v833 = vadd.f32 %v735, %v832
    %v834 = vpop.f32.mrf.mxu0
    %v835 = vadd.f32 %v739, %v834
    %836 = vmatprep.mubr.f32.mxu0 0.0
    %837 = vmatmul.mubr.f32.gmra.mxu0 %v687
    %v838 = vpop.f32.mrf.mxu0
    %v839 = vadd.f32 %v735, %v838
    %v840 = vpop.f32.mrf.mxu0
    %v841 = vadd.f32 %v739, %v840
    %842 = vmatprep.mubr.f32.mxu0 0.0
    %843 = vmatmul.mubr.f32.gmra.mxu0 %v688
    %v844 = vpop.f32.mrf.mxu0
    %v845 = vadd.f32 %v735, %v844
    %v846 = vpop.f32.mrf.mxu0
    %v847 = vadd.f32 %v739, %v846
    %848 = vmatprep.mubr.f32.mxu0 0.0
    %849 = vmatmul.mubr.f32.gmra.mxu0 %v689
    %v850 = vpop.f32.mrf.mxu0
    %v851 = vadd.f32 %v735, %v850
    %v852 = vpop.f32.mrf.mxu0
    %v853 = vadd.f32 %v739, %v852
    %854 = vmatprep.mubr.f32.mxu0 0.0
    %855 = vmatmul.mubr.f32.gmra.mxu0 %v690
    %v856 = vpop.f32.mrf.mxu0
    %v857 = vadd.f32 %v735, %v856
    %v858 = vpop.f32.mrf.mxu0
    %v859 = vadd.f32 %v739, %v858
    %860 = vmatprep.mubr.f32.mxu0 0.0
    %861 = vmatmul.mubr.f32.gmra.mxu0 %v691
    %v862 = vpop.f32.mrf.mxu0
    %v863 = vadd.f32 %v735, %v862
    %v864 = vpop.f32.mrf.mxu0
    %v865 = vadd.f32 %v739, %v864
    %866 = vmatprep.mubr.f32.mxu0 0.0
    %867 = vmatmul.mubr.f32.gmra.mxu0 %v692
    %v868 = vpop.f32.mrf.mxu0
    %v869 = vadd.f32 %v735, %v868
    %v870 = vpop.f32.mrf.mxu0
    %v871 = vadd.f32 %v739, %v870
    %872 = vmatprep.mubr.f32.mxu0 0.0
    %873 = vmatmul.mubr.f32.gmra.mxu0 %v693
    %v874 = vpop.f32.mrf.mxu0
    %v875 = vadd.f32 %v735, %v874
    %v876 = vpop.f32.mrf.mxu0
    %v877 = vadd.f32 %v739, %v876
    %878 = vmatprep.mubr.f32.mxu0 0.0
    %879 = vmatmul.mubr.f32.gmra.mxu0 %v694
    %v880 = vpop.f32.mrf.mxu0
    %v881 = vadd.f32 %v735, %v880
    %v882 = vpop.f32.mrf.mxu0
    %v883 = vadd.f32 %v739, %v882
    %884 = vmatprep.mubr.f32.mxu0 0.0
    %885 = vmatmul.mubr.f32.gmra.mxu0 %v695
    %v886 = vpop.f32.mrf.mxu0
    %v887 = vadd.f32 %v735, %v886
    %v888 = vpop.f32.mrf.mxu0
    %v889 = vadd.f32 %v739, %v888
    %890 = vmatprep.mubr.f32.mxu0 0.0
    %891 = vmatmul.mubr.f32.gmra.mxu0 %v696
    %v892 = vpop.f32.mrf.mxu0
    %v893 = vadd.f32 %v735, %v892
    %v894 = vpop.f32.mrf.mxu0
    %v895 = vadd.f32 %v739, %v894
    %896 = vmatprep.mubr.f32.mxu0 0.0
    %897 = vmatmul.mubr.f32.gmra.mxu0 %v697
    %v898 = vpop.f32.mrf.mxu0
    %v899 = vadd.f32 %v735, %v898
    %v900 = vpop.f32.mrf.mxu0
    %v901 = vadd.f32 %v739, %v900
    %902 = vdwg.mxu0
    %v903 = vmax.f32 %v809, 0.0
    %v904 = vmax.f32 %v815, 0.0
    %v905 = vmax.f32 %v821, 0.0
    %v906 = vmax.f32 %v827, 0.0
    %v907 = vmax.f32 %v833, 0.0
    %v908 = vmax.f32 %v839, 0.0
    %v909 = vmax.f32 %v845, 0.0
    %v910 = vmax.f32 %v851, 0.0
    %v911 = vmax.f32 %v857, 0.0
    %v912 = vmax.f32 %v863, 0.0
    %v913 = vmax.f32 %v869, 0.0
    %v914 = vmax.f32 %v875, 0.0
    %v915 = vmax.f32 %v881, 0.0
    %v916 = vmax.f32 %v887, 0.0
    %v917 = vmax.f32 %v893, 0.0
    %v918 = vmax.f32 %v899, 0.0
    %v919 = vxor.u32 %v811, 2147483648
    %v920 = vxor.u32 %v817, 2147483648
    %v921 = vxor.u32 %v823, 2147483648
    %v922 = vxor.u32 %v829, 2147483648
    %v923 = vxor.u32 %v835, 2147483648
    %v924 = vxor.u32 %v841, 2147483648
    %v925 = vxor.u32 %v847, 2147483648
    %v926 = vxor.u32 %v853, 2147483648
    %v927 = vxor.u32 %v859, 2147483648
    %v928 = vxor.u32 %v865, 2147483648
    %v929 = vxor.u32 %v871, 2147483648
    %v930 = vxor.u32 %v877, 2147483648
    %v931 = vxor.u32 %v883, 2147483648
    %v932 = vxor.u32 %v889, 2147483648
    %v933 = vxor.u32 %v895, 2147483648
    %v934 = vxor.u32 %v901, 2147483648
    %v935 = vmul.f32 %v919, 1.442695
    %v936 = vpow.pop %v935
    %v937 = vmul.f32 %v920, 1.442695
    %v938 = vpow.pop %v937
    %v939 = vmul.f32 %v921, 1.442695
    %v940 = vpow.pop %v939
    %v941 = vmul.f32 %v922, 1.442695
    %v942 = vpow.pop %v941
    %v943 = vmul.f32 %v923, 1.442695
    %v944 = vpow.pop %v943
    %v945 = vmul.f32 %v924, 1.442695
    %v946 = vpow.pop %v945
    %v947 = vmul.f32 %v925, 1.442695
    %v948 = vpow.pop %v947
    %v949 = vmul.f32 %v926, 1.442695
    %v950 = vpow.pop %v949
    %v951 = vmul.f32 %v927, 1.442695
    %v952 = vpow.pop %v951
    %v953 = vmul.f32 %v928, 1.442695
    %v954 = vpow.pop %v953
    %v955 = vmul.f32 %v929, 1.442695
    %v956 = vpow.pop %v955
    %v957 = vmul.f32 %v930, 1.442695
    %v958 = vpow.pop %v957
    %v959 = vmul.f32 %v931, 1.442695
    %v960 = vpow.pop %v959
    %v961 = vmul.f32 %v932, 1.442695
    %v962 = vpow.pop %v961
    %v963 = vmul.f32 %v933, 1.442695
    %v964 = vpow.pop %v963
    %v965 = vmul.f32 %v934, 1.442695
    %v966 = vpow.pop %v965
    %v967 = vadd.f32 %v936, 1.0
    %v968 = vadd.f32 %v938, 1.0
    %v969 = vadd.f32 %v940, 1.0
    %v970 = vadd.f32 %v942, 1.0
    %v971 = vadd.f32 %v944, 1.0
    %v972 = vadd.f32 %v946, 1.0
    %v973 = vadd.f32 %v948, 1.0
    %v974 = vadd.f32 %v950, 1.0
    %v975 = vadd.f32 %v952, 1.0
    %v976 = vadd.f32 %v954, 1.0
    %v977 = vadd.f32 %v956, 1.0
    %v978 = vadd.f32 %v958, 1.0
    %v979 = vadd.f32 %v960, 1.0
    %v980 = vadd.f32 %v962, 1.0
    %v981 = vadd.f32 %v964, 1.0
    %v982 = vadd.f32 %v966, 1.0
    %v983 = vrcp.pop %v967
    %v984 = vmul.f32 1.0, %v983
    %v985 = vrcp.pop %v968
    %v986 = vmul.f32 1.0, %v985
    %v987 = vrcp.pop %v969
    %v988 = vmul.f32 1.0, %v987
    %v989 = vrcp.pop %v970
    %v990 = vmul.f32 1.0, %v989
    %v991 = vrcp.pop %v971
    %v992 = vmul.f32 1.0, %v991
    %v993 = vrcp.pop %v972
    %v994 = vmul.f32 1.0, %v993
    %v995 = vrcp.pop %v973
    %v996 = vmul.f32 1.0, %v995
    %v997 = vrcp.pop %v974
    %v998 = vmul.f32 1.0, %v997
    %v999 = vrcp.pop %v975
    %v1000 = vmul.f32 1.0, %v999
    %v1001 = vrcp.pop %v976
    %v1002 = vmul.f32 1.0, %v1001
    %v1003 = vrcp.pop %v977
    %v1004 = vmul.f32 1.0, %v1003
    %v1005 = vrcp.pop %v978
    %v1006 = vmul.f32 1.0, %v1005
    %v1007 = vrcp.pop %v979
    %v1008 = vmul.f32 1.0, %v1007
    %v1009 = vrcp.pop %v980
    %v1010 = vmul.f32 1.0, %v1009
    %v1011 = vrcp.pop %v981
    %v1012 = vmul.f32 1.0, %v1011
    %v1013 = vrcp.pop %v982
    %v1014 = vmul.f32 1.0, %v1013
    %v1015 = vsub.f32 %v903, %v682
    %v1016 = vsub.f32 %v904, %v683
    %v1017 = vsub.f32 %v905, %v684
    %v1018 = vsub.f32 %v906, %v685
    %v1019 = vsub.f32 %v907, %v686
    %v1020 = vsub.f32 %v908, %v687
    %v1021 = vsub.f32 %v909, %v688
    %v1022 = vsub.f32 %v910, %v689
    %v1023 = vsub.f32 %v911, %v690
    %v1024 = vsub.f32 %v912, %v691
    %v1025 = vsub.f32 %v913, %v692
    %v1026 = vsub.f32 %v914, %v693
    %v1027 = vsub.f32 %v915, %v694
    %v1028 = vsub.f32 %v916, %v695
    %v1029 = vsub.f32 %v917, %v696
    %v1030 = vsub.f32 %v918, %v697
    %v1031 = vmul.f32 %v984, %v1015
    %v1032 = vmul.f32 %v986, %v1016
    %v1033 = vmul.f32 %v988, %v1017
    %v1034 = vmul.f32 %v990, %v1018
    %v1035 = vmul.f32 %v992, %v1019
    %v1036 = vmul.f32 %v994, %v1020
    %v1037 = vmul.f32 %v996, %v1021
    %v1038 = vmul.f32 %v998, %v1022
    %v1039 = vmul.f32 %v1000, %v1023
    %v1040 = vmul.f32 %v1002, %v1024
    %v1041 = vmul.f32 %v1004, %v1025
    %v1042 = vmul.f32 %v1006, %v1026
    %v1043 = vmul.f32 %v1008, %v1027
    %v1044 = vmul.f32 %v1010, %v1028
    %v1045 = vmul.f32 %v1012, %v1029
    %v1046 = vmul.f32 %v1014, %v1030
    %v1047 = vadd.f32 %v682, %v1031
    %v1048 = vadd.f32 %v683, %v1032
    %v1049 = vadd.f32 %v684, %v1033
    %v1050 = vadd.f32 %v685, %v1034
    %v1051 = vadd.f32 %v686, %v1035
    %v1052 = vadd.f32 %v687, %v1036
    %v1053 = vadd.f32 %v688, %v1037
    %v1054 = vadd.f32 %v689, %v1038
    %v1055 = vadd.f32 %v690, %v1039
    %v1056 = vadd.f32 %v691, %v1040
    %v1057 = vadd.f32 %v692, %v1041
    %v1058 = vadd.f32 %v693, %v1042
    %v1059 = vadd.f32 %v694, %v1043
    %v1060 = vadd.f32 %v695, %v1044
    %v1061 = vadd.f32 %v696, %v1045
    %v1062 = vadd.f32 %v697, %v1046
    %1063 = vst [vmem:[#allocation12] sm:$0xff] %v1047
    %1064 = vst [vmem:[#allocation12 + $0x8] sm:$0xff] %v1048
    %1065 = vst [vmem:[#allocation12 + $0x10] sm:$0xff] %v1049
    %1066 = vst [vmem:[#allocation12 + $0x18] sm:$0xff] %v1050
    %1067 = vst [vmem:[#allocation12 + $0x20] sm:$0xff] %v1051
    %1068 = vst [vmem:[#allocation12 + $0x28] sm:$0xff] %v1052
    %1069 = vst [vmem:[#allocation12 + $0x30] sm:$0xff] %v1053
    %1070 = vst [vmem:[#allocation12 + $0x38] sm:$0xff] %v1054
    %1071 = vst [vmem:[#allocation12 + $0x40] sm:$0xff] %v1055
    %1072 = vst [vmem:[#allocation12 + $0x48] sm:$0xff] %v1056
    %1073 = vst [vmem:[#allocation12 + $0x50] sm:$0xff] %v1057
    %1074 = vst [vmem:[#allocation12 + $0x58] sm:$0xff] %v1058
    %1075 = vst [vmem:[#allocation12 + $0x60] sm:$0xff] %v1059
    %1076 = vst [vmem:[#allocation12 + $0x68] sm:$0xff] %v1060
    %1077 = vst [vmem:[#allocation12 + $0x70] sm:$0xff] %v1061
    %1078 = vst [vmem:[#allocation12 + $0x78] sm:$0xff] %v1062
    // Predicated region
    $region71: #{tpu_custom_call.1} parent=1 // pred_check
      _
    $region72: #{tpu_custom_call.1} parent=1 // pred_check_branch
      %1080 = sbr.rel (0) target = $region74
    $region73: #{tpu_custom_call.1} parent=1 // pred_region
      %s1082 = ssub.s32 2048, 2048
      %1083 = vsyncadd [#allocation8], %s1082
      %s1084 = sshll.u32 [#allocation12], 4
      %s1085 = int_to_ptr.vmem [resolvable:$true] %s1084
      %1090 = dma.vmem_to_hbm [thread:$0]  %s1085, 2048, %s7, [#allocation8], 128, 128, 8
    $region74: #{tpu_custom_call.1} parent=1 // pred_fallthru
      _
    // Predicated region
    $region75: #{tpu_custom_call.1} parent=1 // pred_check
      _
    $region76: #{tpu_custom_call.1} parent=1 // pred_check_branch
      %1092 = sbr.rel (0) target = $region78
    $region77: #{tpu_custom_call.1} parent=1 // pred_region
      %1093 = dma.done [#allocation8], 2048
    $region78: #{tpu_custom_call.1} parent=1 // pred_fallthru
      _
    %1094 = vsyncpa [#allocation7], 1
    %1095 = vsyncpa [#allocation10], 1
    %1096 = vsyncpa [#allocation8], 1
  %1097 = vsyncmov [#allocation3]
  %s1098 = vpop.sfrf %1097
  %p1099 = scmp.eq.s32.totalorder %s1098, 0
  %p1100 = pneg %p1099
  %1102 = shalt.err (%p1100)
  %s1103 = scalar_lea.sflag [#allocation3], 1
  %1104 = vsyncmov %s1103
  %s1105 = vpop.sfrf %1104
  %p1106 = scmp.eq.s32.totalorder %s1105, 0
  %p1107 = pneg %p1106
  %1109 = shalt.err (%p1107)

</llo_original>
